<compile_context>
chip_gen: v7x
topology: tpu7x:2x2x1
jax: 0.10.0
libtpu: 0.0.40
codegen_flags: <defaults>
</compile_context>

<pallas_src>
import jax
import jax.numpy as jnp
from jax.experimental import pallas as pl
from jax.experimental.pallas import tpu as pltpu


def _round_up(v, m):
    return (v + m - 1) // m * m


# ---------------- single-shot kernel: full hidden dim per grid step ----------
def _ffn_kernel_fused(x_ref, w1_ref, b1_ref, w2_ref, b2_ref, o_ref):
    # hidden: relu(x @ W1 + b1)   (matmul on MXU in bf16, bias/ReLU in f32)
    h = jnp.dot(x_ref[...], w1_ref[...], preferred_element_type=jnp.float32)
    h = jnp.maximum(h + b1_ref[...], 0.0)
    # output: h @ W2 + b2
    y = jnp.dot(h.astype(w2_ref.dtype), w2_ref[...],
                preferred_element_type=jnp.float32)
    o_ref[...] = (y + b2_ref[...]).astype(o_ref.dtype)


# ---------------- hidden-tiled kernel: accumulate over the hidden axis -------
def _ffn_kernel_ktiled(x_ref, w1_ref, b1_ref, w2_ref, b2_ref, o_ref, acc_ref):
    k = pl.program_id(1)

    @pl.when(k == 0)
    def _():
        acc_ref[...] = jnp.zeros_like(acc_ref)

    # hidden chunk: relu(x @ W1[:, chunk] + b1[chunk])
    h = jnp.dot(x_ref[...], w1_ref[...], preferred_element_type=jnp.float32)
    h = jnp.maximum(h + b1_ref[...], 0.0)

    # accumulate: y += h_chunk @ W2[chunk, :]
    acc_ref[...] += jnp.dot(h.astype(w2_ref.dtype), w2_ref[...],
                            preferred_element_type=jnp.float32)

    @pl.when(k == pl.num_programs(1) - 1)
    def _():
        o_ref[...] = (acc_ref[...] + b2_ref[...]).astype(o_ref.dtype)


def feed_forward(x, w1, b1, w2, b2, *, tm=None, th=None,
                 compute_dtype=jnp.bfloat16,
                 vmem_weight_budget=8 * 1024 * 1024):
    """x: (B, T, C); w1, w2: (C, C) laid out as (in, out); b1, b2: (C,)."""
    B, T, C = x.shape
    M = B * T
    out_dtype = x.dtype

    # Lane-dense padding: every last dim becomes a multiple of 128.
    C_pad = _round_up(C, 128)

    # Hidden tile: default to the full (padded) hidden dim when both weight
    # matrices fit the VMEM budget -> single-shot kernel, no reduction axis.
    itemsize = jnp.dtype(compute_dtype).itemsize
    weight_bytes = 2 * C_pad * C_pad * itemsize
    if th is None:
        th = C_pad if weight_bytes <= vmem_weight_budget else 128
    th = min(_round_up(th, 128), C_pad)
    while C_pad % th:
        th -= 128
    n_k = C_pad // th

    # Row (sublane) alignment: 16 rows per vreg for bf16 inputs, 8 for f32.
    m_align = 16 if jnp.dtype(compute_dtype) == jnp.dtype(jnp.bfloat16) else 8
    if tm is None:
        tm = min(_round_up(M, m_align), 256)
    tm = max(_round_up(tm, m_align), m_align)
    M_pad = _round_up(M, tm)

    # Zero-pad (padded x cols are 0, padded W rows/cols are 0, padded b is 0,
    # so padded hidden units and padded output lanes are exactly 0).
    x2d = jnp.pad(x.reshape(M, C), ((0, M_pad - M), (0, C_pad - C)))
    x2d = x2d.astype(compute_dtype)
    w1p = jnp.pad(w1, ((0, C_pad - C), (0, C_pad - C))).astype(compute_dtype)
    w2p = jnp.pad(w2, ((0, C_pad - C), (0, C_pad - C))).astype(compute_dtype)
    b1p = jnp.pad(b1, (0, C_pad - C)).reshape(1, C_pad).astype(jnp.float32)
    b2p = jnp.pad(b2, (0, C_pad - C)).reshape(1, C_pad).astype(jnp.float32)

    if n_k == 1:
        # Fused single-shot path: grid only over M tiles; weights resident.
        kernel = _ffn_kernel_fused
        grid_spec = pltpu.PrefetchScalarGridSpec(
            num_scalar_prefetch=0,
            grid=(M_pad // tm,),
            in_specs=[
                pl.BlockSpec((tm, C_pad),    lambda i: (i, 0)),   # x
                pl.BlockSpec((C_pad, C_pad), lambda i: (0, 0)),   # W1 (resident)
                pl.BlockSpec((1, C_pad),     lambda i: (0, 0)),   # b1 (resident)
                pl.BlockSpec((C_pad, C_pad), lambda i: (0, 0)),   # W2 (resident)
                pl.BlockSpec((1, C_pad),     lambda i: (0, 0)),   # b2 (resident)
            ],
            out_specs=pl.BlockSpec((tm, C_pad), lambda i: (i, 0)),
        )
        dims = ("parallel",)
    else:
        # Hidden-tiled fallback: stream W1 column tiles / W2 row tiles and
        # accumulate partial products into a f32 VMEM scratch.
        kernel = _ffn_kernel_ktiled
        grid_spec = pltpu.PrefetchScalarGridSpec(
            num_scalar_prefetch=0,
            grid=(M_pad // tm, n_k),
            in_specs=[
                pl.BlockSpec((tm, C_pad), lambda i, k: (i, 0)),   # x (resident over k)
                pl.BlockSpec((C_pad, th), lambda i, k: (0, k)),   # W1 column tile
                pl.BlockSpec((1, th),     lambda i, k: (0, k)),   # b1 chunk
                pl.BlockSpec((th, C_pad), lambda i, k: (k, 0)),   # W2 row tile
                pl.BlockSpec((1, C_pad),  lambda i, k: (0, 0)),   # b2 (resident)
            ],
            out_specs=pl.BlockSpec((tm, C_pad), lambda i, k: (i, 0)),
            scratch_shapes=[pltpu.VMEM((tm, C_pad), jnp.float32)],
        )
        dims = ("parallel", "arbitrary")

    out2d = pl.pallas_call(
        kernel,
        out_shape=jax.ShapeDtypeStruct((M_pad, C_pad), out_dtype),
        grid_spec=grid_spec,
        compiler_params=pltpu.CompilerParams(
            dimension_semantics=dims,
            vmem_limit_bytes=32 * 1024 * 1024,
        ),
    )(x2d, w1p, b1p, w2p, b2p)

    return out2d[:M, :C].reshape(B, T, C)


if __name__ == "__main__":
    # Small deterministic setup consistent with the module: x: (2, 8, 480).
    n_embed = 480
    B, T = 2, 8

    key = jax.random.PRNGKey(0)
    kx, kw1, kb1, kw2, kb2 = jax.random.split(key, 5)

    x = jax.random.normal(kx, (B, T, n_embed), dtype=jnp.float32)

    # nn.Linear-style init: U(-1/sqrt(in), 1/sqrt(in)); weights as (in, out).
    bound = 1.0 / jnp.sqrt(jnp.float32(n_embed))
    w1 = jax.random.uniform(kw1, (n_embed, n_embed), jnp.float32, -bound, bound)
    b1 = jax.random.uniform(kb1, (n_embed,), jnp.float32, -bound, bound)
    w2 = jax.random.uniform(kw2, (n_embed, n_embed), jnp.float32, -bound, bound)
    b2 = jax.random.uniform(kb2, (n_embed,), jnp.float32, -bound, bound)

    # References.
    x2 = x.reshape(-1, n_embed)
    h_bf = jnp.maximum(
        jnp.dot(x2.astype(jnp.bfloat16), w1.astype(jnp.bfloat16),
                preferred_element_type=jnp.float32) + b1, 0.0)
    ref_bf = (jnp.dot(h_bf.astype(jnp.bfloat16), w2.astype(jnp.bfloat16),
                      preferred_element_type=jnp.float32)
              + b2).reshape(B, T, n_embed)
    ref_f32 = (jnp.maximum(x2 @ w1 + b1, 0.0) @ w2 + b2).reshape(B, T, n_embed)

    # Default (single-shot fused) path.
    out = jax.block_until_ready(feed_forward(x, w1, b1, w2, b2))
    assert out.shape == (B, T, n_embed)
    assert jnp.allclose(out, ref_bf, atol=2e-3, rtol=2e-3)
    assert jnp.allclose(out, ref_f32, atol=1e-1, rtol=1e-1)

    # Hidden-tiled fallback path (forced) - validate it too.
    out_k = jax.block_until_ready(feed_forward(x, w1, b1, w2, b2, th=128))
    assert jnp.allclose(out_k, ref_bf, atol=2e-3, rtol=2e-3)
    assert jnp.allclose(out_k, ref_f32, atol=1e-1, rtol=1e-1)

    print("KERNEL_OK")
</pallas_src>

<mosaic_0001>
module attributes {stable_mosaic.version = 11 : i64} {
  func.func @_ffn_kernel_fused(%arg0: i32, %arg1: memref<16x512xbf16, #tpu.memory_space<vmem>>, %arg2: memref<512x512xbf16, #tpu.memory_space<vmem>>, %arg3: memref<1x512xf32, #tpu.memory_space<vmem>>, %arg4: memref<512x512xbf16, #tpu.memory_space<vmem>>, %arg5: memref<1x512xf32, #tpu.memory_space<vmem>>, %arg6: memref<16x512xf32, #tpu.memory_space<vmem>>) attributes {dimension_semantics = [#tpu.dimension_semantics<parallel>], iteration_bounds = array<i64: 1>, scalar_prefetch = 0 : i64, scratch_operands = 0 : i64, tpu.core_type = #tpu.core_type<tc>, window_params = [{transform_indices = @transform_0, window_bounds = array<i64: 16, 512>}, {pipeline_mode = #tpu.pipeline_mode<synchronous>, transform_indices = @transform_1, window_bounds = array<i64: 512, 512>}, {pipeline_mode = #tpu.pipeline_mode<synchronous>, transform_indices = @transform_2, window_bounds = array<i64: 1, 512>}, {pipeline_mode = #tpu.pipeline_mode<synchronous>, transform_indices = @transform_3, window_bounds = array<i64: 512, 512>}, {pipeline_mode = #tpu.pipeline_mode<synchronous>, transform_indices = @transform_4, window_bounds = array<i64: 1, 512>}, {transform_indices = @transform_5, window_bounds = array<i64: 16, 512>}]} {
    %c0 = arith.constant 0 : index
    %c0_0 = arith.constant 0 : index
    %0 = vector.load %arg1[%c0, %c0_0] : memref<16x512xbf16, #tpu.memory_space<vmem>>, vector<16x512xbf16>
    %c0_1 = arith.constant 0 : index
    %c0_2 = arith.constant 0 : index
    %1 = vector.load %arg2[%c0_1, %c0_2] : memref<512x512xbf16, #tpu.memory_space<vmem>>, vector<512x512xbf16>
    %cst = arith.constant dense<0.000000e+00> : vector<16x512xf32>
    %2 = tpu.matmul %0, %1, %cst {dimension_numbers = #tpu.dot_dimension_numbers<[1], [0], [0], [1], [0, 0, 1, 1], [], []>} : vector<16x512xbf16>, vector<512x512xbf16>, vector<16x512xf32> -> vector<16x512xf32>
    %c0_3 = arith.constant 0 : index
    %c0_4 = arith.constant 0 : index
    %3 = vector.load %arg3[%c0_3, %c0_4] : memref<1x512xf32, #tpu.memory_space<vmem>>, vector<1x512xf32>
    %4 = vector.broadcast %3 : vector<1x512xf32> to vector<16x512xf32>
    %5 = arith.addf %2, %4 : vector<16x512xf32>
    %cst_5 = arith.constant 0.000000e+00 : f32
    %6 = vector.broadcast %cst_5 : f32 to vector<16x512xf32>
    %7 = arith.maximumf %5, %6 : vector<16x512xf32>
    %8 = arith.truncf %7 : vector<16x512xf32> to vector<16x512xbf16>
    %c0_6 = arith.constant 0 : index
    %c0_7 = arith.constant 0 : index
    %9 = vector.load %arg4[%c0_6, %c0_7] : memref<512x512xbf16, #tpu.memory_space<vmem>>, vector<512x512xbf16>
    %cst_8 = arith.constant dense<0.000000e+00> : vector<16x512xf32>
    %10 = tpu.matmul %8, %9, %cst_8 {dimension_numbers = #tpu.dot_dimension_numbers<[1], [0], [0], [1], [0, 0, 1, 1], [], []>} : vector<16x512xbf16>, vector<512x512xbf16>, vector<16x512xf32> -> vector<16x512xf32>
    %c0_9 = arith.constant 0 : index
    %c0_10 = arith.constant 0 : index
    %11 = vector.load %arg5[%c0_9, %c0_10] : memref<1x512xf32, #tpu.memory_space<vmem>>, vector<1x512xf32>
    %12 = vector.broadcast %11 : vector<1x512xf32> to vector<16x512xf32>
    %13 = arith.addf %10, %12 : vector<16x512xf32>
    %c0_11 = arith.constant 0 : index
    %c0_12 = arith.constant 0 : index
    %14 = vector.load %arg6[%c0_11, %c0_12] : memref<16x512xf32, #tpu.memory_space<vmem>>, vector<16x512xf32>
    tpu.vector_store %arg6[%c0_11, %c0_12], %13 {strides = array<i32>} : memref<16x512xf32, #tpu.memory_space<vmem>>, vector<16x512xf32>,
    return
  }
  func.func @transform_0(%arg0: i32) -> (i32, i32) {
    %c0_i32 = arith.constant 0 : i32
    %c0_i32_0 = arith.constant 0 : i32
    return %arg0, %c0_i32 : i32, i32
  }
  func.func @transform_1(%arg0: i32) -> (i32, i32) {
    %c0_i32 = arith.constant 0 : i32
    %c0_i32_0 = arith.constant 0 : i32
    %c0_i32_1 = arith.constant 0 : i32
    return %c0_i32, %c0_i32_0 : i32, i32
  }
  func.func @transform_2(%arg0: i32) -> (i32, i32) {
    %c0_i32 = arith.constant 0 : i32
    %c0_i32_0 = arith.constant 0 : i32
    %c0_i32_1 = arith.constant 0 : i32
    return %c0_i32, %c0_i32_0 : i32, i32
  }
  func.func @transform_3(%arg0: i32) -> (i32, i32) {
    %c0_i32 = arith.constant 0 : i32
    %c0_i32_0 = arith.constant 0 : i32
    %c0_i32_1 = arith.constant 0 : i32
    return %c0_i32, %c0_i32_0 : i32, i32
  }
  func.func @transform_4(%arg0: i32) -> (i32, i32) {
    %c0_i32 = arith.constant 0 : i32
    %c0_i32_0 = arith.constant 0 : i32
    %c0_i32_1 = arith.constant 0 : i32
    return %c0_i32, %c0_i32_0 : i32, i32
  }
  func.func @transform_5(%arg0: i32) -> (i32, i32) {
    %c0_i32 = arith.constant 0 : i32
    %c0_i32_0 = arith.constant 0 : i32
    return %arg0, %c0_i32 : i32, i32
  }
}

</mosaic_0001>

<llo_original>
// kernel: tpu_custom_call.1
$region0: #{tpu_custom_call.1}
  #allocation0 [shape = 'u32[]', space=smem, size = 0x4, offset = 0x4, fixed_abs, tag = 'smem constant byte address 0x4 - core index']
  #allocation1 [shape = 'u32[144,128]{1,0:T(1,128)}', space=vmem, size = 0x12000, scoped, tag = 'internal scratch']
  %s0 = inlined_call_operand.hbm [shape: bf16[16,512], index: 0, kind: input, shape index: {}]
  %s1 = inlined_call_operand.hbm [shape: bf16[512,512], index: 1, kind: input, shape index: {}]
  %s2 = inlined_call_operand.vmem [shape: f32[1,512], index: 2, kind: input, shape index: {}]
  %s3 = inlined_call_operand.hbm [shape: bf16[512,512], index: 3, kind: input, shape index: {}]
  %s4 = inlined_call_operand.vmem [shape: f32[1,512], index: 4, kind: input, shape index: {}]
  %s5 = inlined_call_operand.hbm [shape: f32[16,512], index: 5, kind: output, shape index: {}]
  %s6 = sld [smem:[#allocation0]]
  $region42: #{tpu_custom_call.1} parent=0
    _
  %s8 = ssub.s32 1, %s6
  %s9 = scalar_select 0, %s8, %s6
  $region1: #{tpu_custom_call.1} parent=0
    #allocation2 [shape = 'u8[16384]{0}', space=vmem, size = 0x4000, scoped, tag = 'input window, operand 0, single buffered']
    #allocation3 [shape = 's32[1]{0}', space=sflag, size = 0x4, scoped, tag = 'scoped memory for tpu_custom_call.1']
    #allocation4 [shape = 's32[1]{0}', space=sflag, size = 0x4, scoped, tag = 'scoped memory for tpu_custom_call.1']
    #allocation5 [shape = 'u8[524288]{0}', space=vmem, size = 0x80000, scoped, tag = 'input window, operand 1, single buffered']
    #allocation6 [shape = 's32[1]{0}', space=sflag, size = 0x4, scoped, tag = 'scoped memory for tpu_custom_call.1']
    #allocation7 [shape = 'u8[524288]{0}', space=vmem, size = 0x80000, scoped, tag = 'input window, operand 3, single buffered']
    #allocation8 [shape = 'u8[32768]{0}', space=vmem, size = 0x8000, scoped, tag = 'output window, operand 0, single buffered']
    %10 = vsyncpa [#allocation3], 0
    %11 = vsyncpa [#allocation6], 0
    %12 = vsyncpa [#allocation4], 0
    // Predicated region
    $region2: #{tpu_custom_call.1} parent=1 // pred_check
      _
    $region3: #{tpu_custom_call.1} parent=1 // pred_check_branch
      %14 = sbr.rel (0) target = $region5
    $region4: #{tpu_custom_call.1} parent=1 // pred_region
      %s16 = ssub.s32 512, 512
      %17 = vsyncadd [#allocation3], %s16
      %s18 = sshll.u32 [#allocation2], 4
      %s19 = int_to_ptr.vmem [resolvable:$true] %s18
      %24 = dma.hbm_to_vmem [thread:$0]  %s0, 512, %s19, [#allocation3], 256, 256, 16
    $region5: #{tpu_custom_call.1} parent=1 // pred_fallthru
      _
    // Predicated region
    $region6: #{tpu_custom_call.1} parent=1 // pred_check
      _
    $region7: #{tpu_custom_call.1} parent=1 // pred_check_branch
      %26 = sbr.rel (0) target = $region9
    $region8: #{tpu_custom_call.1} parent=1 // pred_region
      %s28 = ssub.s32 16384, 16384
      %29 = vsyncadd [#allocation6], %s28
      %s30 = sshll.u32 [#allocation5], 4
      %s31 = int_to_ptr.vmem [resolvable:$true] %s30
      %36 = dma.hbm_to_vmem [thread:$0]  %s1, 16384, %s31, [#allocation6], 256, 256, 16
    $region9: #{tpu_custom_call.1} parent=1 // pred_fallthru
      _
    // Predicated region
    $region10: #{tpu_custom_call.1} parent=1 // pred_check
      _
    $region11: #{tpu_custom_call.1} parent=1 // pred_check_branch
      %38 = sbr.rel (0) target = $region13
    $region12: #{tpu_custom_call.1} parent=1 // pred_region
      _
    $region13: #{tpu_custom_call.1} parent=1 // pred_fallthru
      _
    // Predicated region
    $region14: #{tpu_custom_call.1} parent=1 // pred_check
      _
    $region15: #{tpu_custom_call.1} parent=1 // pred_check_branch
      %40 = sbr.rel (0) target = $region17
    $region16: #{tpu_custom_call.1} parent=1 // pred_region
      %s42 = ssub.s32 16384, 16384
      %43 = vsyncadd [#allocation6], %s42
      %s44 = sshll.u32 [#allocation7], 4
      %s45 = int_to_ptr.vmem [resolvable:$true] %s44
      %50 = dma.hbm_to_vmem [thread:$0]  %s3, 16384, %s45, [#allocation6], 256, 256, 16
    $region17: #{tpu_custom_call.1} parent=1 // pred_fallthru
      _
    // Predicated region
    $region18: #{tpu_custom_call.1} parent=1 // pred_check
      _
    $region19: #{tpu_custom_call.1} parent=1 // pred_check_branch
      %52 = sbr.rel (0) target = $region21
    $region20: #{tpu_custom_call.1} parent=1 // pred_region
      _
    $region21: #{tpu_custom_call.1} parent=1 // pred_fallthru
      _
    // Predicated region
    $region22: #{tpu_custom_call.1} parent=1 // pred_check
      _
    $region23: #{tpu_custom_call.1} parent=1 // pred_check_branch
      %54 = sbr.rel (0) target = $region25
    $region24: #{tpu_custom_call.1} parent=1 // pred_region
      %55 = dma.done [#allocation3], 512
    $region25: #{tpu_custom_call.1} parent=1 // pred_fallthru
      _
    // Predicated region
    $region26: #{tpu_custom_call.1} parent=1 // pred_check
      _
    $region27: #{tpu_custom_call.1} parent=1 // pred_check_branch
      %57 = sbr.rel (0) target = $region29
    $region28: #{tpu_custom_call.1} parent=1 // pred_region
      %58 = dma.done [#allocation6], 16384
    $region29: #{tpu_custom_call.1} parent=1 // pred_fallthru
      _
    // Predicated region
    $region30: #{tpu_custom_call.1} parent=1 // pred_check
      _
    $region31: #{tpu_custom_call.1} parent=1 // pred_check_branch
      %60 = sbr.rel (0) target = $region33
    $region32: #{tpu_custom_call.1} parent=1 // pred_region
      %61 = dma.done [#allocation6], 16384
    $region33: #{tpu_custom_call.1} parent=1 // pred_fallthru
      _
    %v62 = vld [vmem:[#allocation2] sm:$0xff]
    %v63 = vld [vmem:[#allocation2 + $0x8] sm:$0xff]
    %v64 = vld [vmem:[#allocation2 + $0x10] sm:$0xff]
    %v65 = vld [vmem:[#allocation2 + $0x18] sm:$0xff]
    %v66 = vld [vmem:[#allocation5] sm:$0xff]
    %v67 = vld [vmem:[#allocation5 + $0x8] sm:$0xff]
    %v68 = vld [vmem:[#allocation5 + $0x10] sm:$0xff]
    %v69 = vld [vmem:[#allocation5 + $0x18] sm:$0xff]
    %v70 = vld [vmem:[#allocation5 + $0x20] sm:$0xff]
    %v71 = vld [vmem:[#allocation5 + $0x28] sm:$0xff]
    %v72 = vld [vmem:[#allocation5 + $0x30] sm:$0xff]
    %v73 = vld [vmem:[#allocation5 + $0x38] sm:$0xff]
    %v74 = vld [vmem:[#allocation5 + $0x40] sm:$0xff]
    %v75 = vld [vmem:[#allocation5 + $0x48] sm:$0xff]
    %v76 = vld [vmem:[#allocation5 + $0x50] sm:$0xff]
    %v77 = vld [vmem:[#allocation5 + $0x58] sm:$0xff]
    %v78 = vld [vmem:[#allocation5 + $0x60] sm:$0xff]
    %v79 = vld [vmem:[#allocation5 + $0x68] sm:$0xff]
    %v80 = vld [vmem:[#allocation5 + $0x70] sm:$0xff]
    %v81 = vld [vmem:[#allocation5 + $0x78] sm:$0xff]
    %v82 = vld [vmem:[#allocation5 + $0x80] sm:$0xff]
    %v83 = vld [vmem:[#allocation5 + $0x88] sm:$0xff]
    %v84 = vld [vmem:[#allocation5 + $0x90] sm:$0xff]
    %v85 = vld [vmem:[#allocation5 + $0x98] sm:$0xff]
    %v86 = vld [vmem:[#allocation5 + $0xa0] sm:$0xff]
    %v87 = vld [vmem:[#allocation5 + $0xa8] sm:$0xff]
    %v88 = vld [vmem:[#allocation5 + $0xb0] sm:$0xff]
    %v89 = vld [vmem:[#allocation5 + $0xb8] sm:$0xff]
    %v90 = vld [vmem:[#allocation5 + $0xc0] sm:$0xff]
    %v91 = vld [vmem:[#allocation5 + $0xc8] sm:$0xff]
    %v92 = vld [vmem:[#allocation5 + $0xd0] sm:$0xff]
    %v93 = vld [vmem:[#allocation5 + $0xd8] sm:$0xff]
    %v94 = vld [vmem:[#allocation5 + $0xe0] sm:$0xff]
    %v95 = vld [vmem:[#allocation5 + $0xe8] sm:$0xff]
    %v96 = vld [vmem:[#allocation5 + $0xf0] sm:$0xff]
    %v97 = vld [vmem:[#allocation5 + $0xf8] sm:$0xff]
    %v98 = vld [vmem:[#allocation5 + $0x100] sm:$0xff]
    %v99 = vld [vmem:[#allocation5 + $0x108] sm:$0xff]
    %v100 = vld [vmem:[#allocation5 + $0x110] sm:$0xff]
    %v101 = vld [vmem:[#allocation5 + $0x118] sm:$0xff]
    %v102 = vld [vmem:[#allocation5 + $0x120] sm:$0xff]
    %v103 = vld [vmem:[#allocation5 + $0x128] sm:$0xff]
    %v104 = vld [vmem:[#allocation5 + $0x130] sm:$0xff]
    %v105 = vld [vmem:[#allocation5 + $0x138] sm:$0xff]
    %v106 = vld [vmem:[#allocation5 + $0x140] sm:$0xff]
    %v107 = vld [vmem:[#allocation5 + $0x148] sm:$0xff]
    %v108 = vld [vmem:[#allocation5 + $0x150] sm:$0xff]
    %v109 = vld [vmem:[#allocation5 + $0x158] sm:$0xff]
    %v110 = vld [vmem:[#allocation5 + $0x160] sm:$0xff]
    %v111 = vld [vmem:[#allocation5 + $0x168] sm:$0xff]
    %v112 = vld [vmem:[#allocation5 + $0x170] sm:$0xff]
    %v113 = vld [vmem:[#allocation5 + $0x178] sm:$0xff]
    %v114 = vld [vmem:[#allocation5 + $0x180] sm:$0xff]
    %v115 = vld [vmem:[#allocation5 + $0x188] sm:$0xff]
    %v116 = vld [vmem:[#allocation5 + $0x190] sm:$0xff]
    %v117 = vld [vmem:[#allocation5 + $0x198] sm:$0xff]
    %v118 = vld [vmem:[#allocation5 + $0x1a0] sm:$0xff]
    %v119 = vld [vmem:[#allocation5 + $0x1a8] sm:$0xff]
    %v120 = vld [vmem:[#allocation5 + $0x1b0] sm:$0xff]
    %v121 = vld [vmem:[#allocation5 + $0x1b8] sm:$0xff]
    %v122 = vld [vmem:[#allocation5 + $0x1c0] sm:$0xff]
    %v123 = vld [vmem:[#allocation5 + $0x1c8] sm:$0xff]
    %v124 = vld [vmem:[#allocation5 + $0x1d0] sm:$0xff]
    %v125 = vld [vmem:[#allocation5 + $0x1d8] sm:$0xff]
    %v126 = vld [vmem:[#allocation5 + $0x1e0] sm:$0xff]
    %v127 = vld [vmem:[#allocation5 + $0x1e8] sm:$0xff]
    %v128 = vld [vmem:[#allocation5 + $0x1f0] sm:$0xff]
    %v129 = vld [vmem:[#allocation5 + $0x1f8] sm:$0xff]
    %v130 = vld [vmem:[#allocation5 + $0x200] sm:$0xff]
    %v131 = vld [vmem:[#allocation5 + $0x208] sm:$0xff]
    %v132 = vld [vmem:[#allocation5 + $0x210] sm:$0xff]
    %v133 = vld [vmem:[#allocation5 + $0x218] sm:$0xff]
    %v134 = vld [vmem:[#allocation5 + $0x220] sm:$0xff]
    %v135 = vld [vmem:[#allocation5 + $0x228] sm:$0xff]
    %v136 = vld [vmem:[#allocation5 + $0x230] sm:$0xff]
    %v137 = vld [vmem:[#allocation5 + $0x238] sm:$0xff]
    %v138 = vld [vmem:[#allocation5 + $0x240] sm:$0xff]
    %v139 = vld [vmem:[#allocation5 + $0x248] sm:$0xff]
    %v140 = vld [vmem:[#allocation5 + $0x250] sm:$0xff]
    %v141 = vld [vmem:[#allocation5 + $0x258] sm:$0xff]
    %v142 = vld [vmem:[#allocation5 + $0x260] sm:$0xff]
    %v143 = vld [vmem:[#allocation5 + $0x268] sm:$0xff]
    %v144 = vld [vmem:[#allocation5 + $0x270] sm:$0xff]
    %v145 = vld [vmem:[#allocation5 + $0x278] sm:$0xff]
    %v146 = vld [vmem:[#allocation5 + $0x280] sm:$0xff]
    %v147 = vld [vmem:[#allocation5 + $0x288] sm:$0xff]
    %v148 = vld [vmem:[#allocation5 + $0x290] sm:$0xff]
    %v149 = vld [vmem:[#allocation5 + $0x298] sm:$0xff]
    %v150 = vld [vmem:[#allocation5 + $0x2a0] sm:$0xff]
    %v151 = vld [vmem:[#allocation5 + $0x2a8] sm:$0xff]
    %v152 = vld [vmem:[#allocation5 + $0x2b0] sm:$0xff]
    %v153 = vld [vmem:[#allocation5 + $0x2b8] sm:$0xff]
    %v154 = vld [vmem:[#allocation5 + $0x2c0] sm:$0xff]
    %v155 = vld [vmem:[#allocation5 + $0x2c8] sm:$0xff]
    %v156 = vld [vmem:[#allocation5 + $0x2d0] sm:$0xff]
    %v157 = vld [vmem:[#allocation5 + $0x2d8] sm:$0xff]
    %v158 = vld [vmem:[#allocation5 + $0x2e0] sm:$0xff]
    %v159 = vld [vmem:[#allocation5 + $0x2e8] sm:$0xff]
    %v160 = vld [vmem:[#allocation5 + $0x2f0] sm:$0xff]
    %v161 = vld [vmem:[#allocation5 + $0x2f8] sm:$0xff]
    %v162 = vld [vmem:[#allocation5 + $0x300] sm:$0xff]
    %v163 = vld [vmem:[#allocation5 + $0x308] sm:$0xff]
    %v164 = vld [vmem:[#allocation5 + $0x310] sm:$0xff]
    %v165 = vld [vmem:[#allocation5 + $0x318] sm:$0xff]
    %v166 = vld [vmem:[#allocation5 + $0x320] sm:$0xff]
    %v167 = vld [vmem:[#allocation5 + $0x328] sm:$0xff]
    %v168 = vld [vmem:[#allocation5 + $0x330] sm:$0xff]
    %v169 = vld [vmem:[#allocation5 + $0x338] sm:$0xff]
    %v170 = vld [vmem:[#allocation5 + $0x340] sm:$0xff]
    %v171 = vld [vmem:[#allocation5 + $0x348] sm:$0xff]
    %v172 = vld [vmem:[#allocation5 + $0x350] sm:$0xff]
    %v173 = vld [vmem:[#allocation5 + $0x358] sm:$0xff]
    %v174 = vld [vmem:[#allocation5 + $0x360] sm:$0xff]
    %v175 = vld [vmem:[#allocation5 + $0x368] sm:$0xff]
    %v176 = vld [vmem:[#allocation5 + $0x370] sm:$0xff]
    %v177 = vld [vmem:[#allocation5 + $0x378] sm:$0xff]
    %v178 = vld [vmem:[#allocation5 + $0x380] sm:$0xff]
    %v179 = vld [vmem:[#allocation5 + $0x388] sm:$0xff]
    %v180 = vld [vmem:[#allocation5 + $0x390] sm:$0xff]
    %v181 = vld [vmem:[#allocation5 + $0x398] sm:$0xff]
    %v182 = vld [vmem:[#allocation5 + $0x3a0] sm:$0xff]
    %v183 = vld [vmem:[#allocation5 + $0x3a8] sm:$0xff]
    %v184 = vld [vmem:[#allocation5 + $0x3b0] sm:$0xff]
    %v185 = vld [vmem:[#allocation5 + $0x3b8] sm:$0xff]
    %v186 = vld [vmem:[#allocation5 + $0x3c0] sm:$0xff]
    %v187 = vld [vmem:[#allocation5 + $0x3c8] sm:$0xff]
    %v188 = vld [vmem:[#allocation5 + $0x3d0] sm:$0xff]
    %v189 = vld [vmem:[#allocation5 + $0x3d8] sm:$0xff]
    %v190 = vld [vmem:[#allocation5 + $0x3e0] sm:$0xff]
    %v191 = vld [vmem:[#allocation5 + $0x3e8] sm:$0xff]
    %v192 = vld [vmem:[#allocation5 + $0x3f0] sm:$0xff]
    %v193 = vld [vmem:[#allocation5 + $0x3f8] sm:$0xff]
    %v194 = vld [vmem:[%s2] sm:$0xf]
    %v196 = vlaneseq
    %v197 = vshrl.u32 %v196, 7
    %v198 = vsub.s32 0, %v197
    %v199 = vrot.slane %v194, %v198
    %v200 = vlaneseq
    %v201 = vshrl.u32 %v200, 7
    %v202 = vsub.s32 1, %v201
    %v203 = vrot.slane %v194, %v202
    %v204 = vlaneseq
    %v205 = vshrl.u32 %v204, 7
    %v206 = vsub.s32 2, %v205
    %v207 = vrot.slane %v194, %v206
    %v208 = vlaneseq
    %v209 = vshrl.u32 %v208, 7
    %v210 = vsub.s32 3, %v209
    %v211 = vrot.slane %v194, %v210
    %v220 = vunpack.c.l.b16 %v62
    %v221 = vunpack.c.h.b16 %v62
    %v222 = vunpack.c.l.b16 %v63
    %v223 = vunpack.c.h.b16 %v63
    %v224 = vunpack.c.l.b16 %v64
    %v225 = vunpack.c.h.b16 %v64
    %v226 = vunpack.c.l.b16 %v65
    %v227 = vunpack.c.h.b16 %v65
    %v228 = vpack.c.b16 %v224, %v220
    %v229 = vpack.c.b16 %v225, %v221
    %v230 = vpack.c.b16 %v226, %v222
    %v231 = vpack.c.b16 %v227, %v223
    %v364 = vunpack.c.l.b16 %v66
    %v365 = vunpack.c.h.b16 %v66
    %v366 = vunpack.c.l.b16 %v67
    %v367 = vunpack.c.h.b16 %v67
    %v368 = vunpack.c.l.b16 %v68
    %v369 = vunpack.c.h.b16 %v68
    %v370 = vunpack.c.l.b16 %v69
    %v371 = vunpack.c.h.b16 %v69
    %v372 = vunpack.c.l.b16 %v70
    %v373 = vunpack.c.h.b16 %v70
    %v374 = vunpack.c.l.b16 %v71
    %v375 = vunpack.c.h.b16 %v71
    %v376 = vunpack.c.l.b16 %v72
    %v377 = vunpack.c.h.b16 %v72
    %v378 = vunpack.c.l.b16 %v73
    %v379 = vunpack.c.h.b16 %v73
    %v380 = vunpack.c.l.b16 %v74
    %v381 = vunpack.c.h.b16 %v74
    %v382 = vunpack.c.l.b16 %v75
    %v383 = vunpack.c.h.b16 %v75
    %v384 = vunpack.c.l.b16 %v76
    %v385 = vunpack.c.h.b16 %v76
    %v386 = vunpack.c.l.b16 %v77
    %v387 = vunpack.c.h.b16 %v77
    %v388 = vunpack.c.l.b16 %v78
    %v389 = vunpack.c.h.b16 %v78
    %v390 = vunpack.c.l.b16 %v79
    %v391 = vunpack.c.h.b16 %v79
    %v392 = vunpack.c.l.b16 %v80
    %v393 = vunpack.c.h.b16 %v80
    %v394 = vunpack.c.l.b16 %v81
    %v395 = vunpack.c.h.b16 %v81
    %v396 = vunpack.c.l.b16 %v82
    %v397 = vunpack.c.h.b16 %v82
    %v398 = vunpack.c.l.b16 %v83
    %v399 = vunpack.c.h.b16 %v83
    %v400 = vunpack.c.l.b16 %v84
    %v401 = vunpack.c.h.b16 %v84
    %v402 = vunpack.c.l.b16 %v85
    %v403 = vunpack.c.h.b16 %v85
    %v404 = vunpack.c.l.b16 %v86
    %v405 = vunpack.c.h.b16 %v86
    %v406 = vunpack.c.l.b16 %v87
    %v407 = vunpack.c.h.b16 %v87
    %v408 = vunpack.c.l.b16 %v88
    %v409 = vunpack.c.h.b16 %v88
    %v410 = vunpack.c.l.b16 %v89
    %v411 = vunpack.c.h.b16 %v89
    %v412 = vunpack.c.l.b16 %v90
    %v413 = vunpack.c.h.b16 %v90
    %v414 = vunpack.c.l.b16 %v91
    %v415 = vunpack.c.h.b16 %v91
    %v416 = vunpack.c.l.b16 %v92
    %v417 = vunpack.c.h.b16 %v92
    %v418 = vunpack.c.l.b16 %v93
    %v419 = vunpack.c.h.b16 %v93
    %v420 = vunpack.c.l.b16 %v94
    %v421 = vunpack.c.h.b16 %v94
    %v422 = vunpack.c.l.b16 %v95
    %v423 = vunpack.c.h.b16 %v95
    %v424 = vunpack.c.l.b16 %v96
    %v425 = vunpack.c.h.b16 %v96
    %v426 = vunpack.c.l.b16 %v97
    %v427 = vunpack.c.h.b16 %v97
    %v428 = vunpack.c.l.b16 %v98
    %v429 = vunpack.c.h.b16 %v98
    %v430 = vunpack.c.l.b16 %v99
    %v431 = vunpack.c.h.b16 %v99
    %v432 = vunpack.c.l.b16 %v100
    %v433 = vunpack.c.h.b16 %v100
    %v434 = vunpack.c.l.b16 %v101
    %v435 = vunpack.c.h.b16 %v101
    %v436 = vunpack.c.l.b16 %v102
    %v437 = vunpack.c.h.b16 %v102
    %v438 = vunpack.c.l.b16 %v103
    %v439 = vunpack.c.h.b16 %v103
    %v440 = vunpack.c.l.b16 %v104
    %v441 = vunpack.c.h.b16 %v104
    %v442 = vunpack.c.l.b16 %v105
    %v443 = vunpack.c.h.b16 %v105
    %v444 = vunpack.c.l.b16 %v106
    %v445 = vunpack.c.h.b16 %v106
    %v446 = vunpack.c.l.b16 %v107
    %v447 = vunpack.c.h.b16 %v107
    %v448 = vunpack.c.l.b16 %v108
    %v449 = vunpack.c.h.b16 %v108
    %v450 = vunpack.c.l.b16 %v109
    %v451 = vunpack.c.h.b16 %v109
    %v452 = vunpack.c.l.b16 %v110
    %v453 = vunpack.c.h.b16 %v110
    %v454 = vunpack.c.l.b16 %v111
    %v455 = vunpack.c.h.b16 %v111
    %v456 = vunpack.c.l.b16 %v112
    %v457 = vunpack.c.h.b16 %v112
    %v458 = vunpack.c.l.b16 %v113
    %v459 = vunpack.c.h.b16 %v113
    %v460 = vunpack.c.l.b16 %v114
    %v461 = vunpack.c.h.b16 %v114
    %v462 = vunpack.c.l.b16 %v115
    %v463 = vunpack.c.h.b16 %v115
    %v464 = vunpack.c.l.b16 %v116
    %v465 = vunpack.c.h.b16 %v116
    %v466 = vunpack.c.l.b16 %v117
    %v467 = vunpack.c.h.b16 %v117
    %v468 = vunpack.c.l.b16 %v118
    %v469 = vunpack.c.h.b16 %v118
    %v470 = vunpack.c.l.b16 %v119
    %v471 = vunpack.c.h.b16 %v119
    %v472 = vunpack.c.l.b16 %v120
    %v473 = vunpack.c.h.b16 %v120
    %v474 = vunpack.c.l.b16 %v121
    %v475 = vunpack.c.h.b16 %v121
    %v476 = vunpack.c.l.b16 %v122
    %v477 = vunpack.c.h.b16 %v122
    %v478 = vunpack.c.l.b16 %v123
    %v479 = vunpack.c.h.b16 %v123
    %v480 = vunpack.c.l.b16 %v124
    %v481 = vunpack.c.h.b16 %v124
    %v482 = vunpack.c.l.b16 %v125
    %v483 = vunpack.c.h.b16 %v125
    %v484 = vunpack.c.l.b16 %v126
    %v485 = vunpack.c.h.b16 %v126
    %v486 = vunpack.c.l.b16 %v127
    %v487 = vunpack.c.h.b16 %v127
    %v488 = vunpack.c.l.b16 %v128
    %v489 = vunpack.c.h.b16 %v128
    %v490 = vunpack.c.l.b16 %v129
    %v491 = vunpack.c.h.b16 %v129
    %v492 = vunpack.c.l.b16 %v130
    %v493 = vunpack.c.h.b16 %v130
    %v494 = vunpack.c.l.b16 %v131
    %v495 = vunpack.c.h.b16 %v131
    %v496 = vunpack.c.l.b16 %v132
    %v497 = vunpack.c.h.b16 %v132
    %v498 = vunpack.c.l.b16 %v133
    %v499 = vunpack.c.h.b16 %v133
    %v500 = vunpack.c.l.b16 %v134
    %v501 = vunpack.c.h.b16 %v134
    %v502 = vunpack.c.l.b16 %v135
    %v503 = vunpack.c.h.b16 %v135
    %v504 = vunpack.c.l.b16 %v136
    %v505 = vunpack.c.h.b16 %v136
    %v506 = vunpack.c.l.b16 %v137
    %v507 = vunpack.c.h.b16 %v137
    %v508 = vunpack.c.l.b16 %v138
    %v509 = vunpack.c.h.b16 %v138
    %v510 = vunpack.c.l.b16 %v139
    %v511 = vunpack.c.h.b16 %v139
    %v512 = vunpack.c.l.b16 %v140
    %v513 = vunpack.c.h.b16 %v140
    %v514 = vunpack.c.l.b16 %v141
    %v515 = vunpack.c.h.b16 %v141
    %v516 = vunpack.c.l.b16 %v142
    %v517 = vunpack.c.h.b16 %v142
    %v518 = vunpack.c.l.b16 %v143
    %v519 = vunpack.c.h.b16 %v143
    %v520 = vunpack.c.l.b16 %v144
    %v521 = vunpack.c.h.b16 %v144
    %v522 = vunpack.c.l.b16 %v145
    %v523 = vunpack.c.h.b16 %v145
    %v524 = vunpack.c.l.b16 %v146
    %v525 = vunpack.c.h.b16 %v146
    %v526 = vunpack.c.l.b16 %v147
    %v527 = vunpack.c.h.b16 %v147
    %v528 = vunpack.c.l.b16 %v148
    %v529 = vunpack.c.h.b16 %v148
    %v530 = vunpack.c.l.b16 %v149
    %v531 = vunpack.c.h.b16 %v149
    %v532 = vunpack.c.l.b16 %v150
    %v533 = vunpack.c.h.b16 %v150
    %v534 = vunpack.c.l.b16 %v151
    %v535 = vunpack.c.h.b16 %v151
    %v536 = vunpack.c.l.b16 %v152
    %v537 = vunpack.c.h.b16 %v152
    %v538 = vunpack.c.l.b16 %v153
    %v539 = vunpack.c.h.b16 %v153
    %v540 = vunpack.c.l.b16 %v154
    %v541 = vunpack.c.h.b16 %v154
    %v542 = vunpack.c.l.b16 %v155
    %v543 = vunpack.c.h.b16 %v155
    %v544 = vunpack.c.l.b16 %v156
    %v545 = vunpack.c.h.b16 %v156
    %v546 = vunpack.c.l.b16 %v157
    %v547 = vunpack.c.h.b16 %v157
    %v548 = vunpack.c.l.b16 %v158
    %v549 = vunpack.c.h.b16 %v158
    %v550 = vunpack.c.l.b16 %v159
    %v551 = vunpack.c.h.b16 %v159
    %v552 = vunpack.c.l.b16 %v160
    %v553 = vunpack.c.h.b16 %v160
    %v554 = vunpack.c.l.b16 %v161
    %v555 = vunpack.c.h.b16 %v161
    %v556 = vunpack.c.l.b16 %v162
    %v557 = vunpack.c.h.b16 %v162
    %v558 = vunpack.c.l.b16 %v163
    %v559 = vunpack.c.h.b16 %v163
    %v560 = vunpack.c.l.b16 %v164
    %v561 = vunpack.c.h.b16 %v164
    %v562 = vunpack.c.l.b16 %v165
    %v563 = vunpack.c.h.b16 %v165
    %v564 = vunpack.c.l.b16 %v166
    %v565 = vunpack.c.h.b16 %v166
    %v566 = vunpack.c.l.b16 %v167
    %v567 = vunpack.c.h.b16 %v167
    %v568 = vunpack.c.l.b16 %v168
    %v569 = vunpack.c.h.b16 %v168
    %v570 = vunpack.c.l.b16 %v169
    %v571 = vunpack.c.h.b16 %v169
    %v572 = vunpack.c.l.b16 %v170
    %v573 = vunpack.c.h.b16 %v170
    %v574 = vunpack.c.l.b16 %v171
    %v575 = vunpack.c.h.b16 %v171
    %v576 = vunpack.c.l.b16 %v172
    %v577 = vunpack.c.h.b16 %v172
    %v578 = vunpack.c.l.b16 %v173
    %v579 = vunpack.c.h.b16 %v173
    %v580 = vunpack.c.l.b16 %v174
    %v581 = vunpack.c.h.b16 %v174
    %v582 = vunpack.c.l.b16 %v175
    %v583 = vunpack.c.h.b16 %v175
    %v584 = vunpack.c.l.b16 %v176
    %v585 = vunpack.c.h.b16 %v176
    %v586 = vunpack.c.l.b16 %v177
    %v587 = vunpack.c.h.b16 %v177
    %v588 = vunpack.c.l.b16 %v178
    %v589 = vunpack.c.h.b16 %v178
    %v590 = vunpack.c.l.b16 %v179
    %v591 = vunpack.c.h.b16 %v179
    %v592 = vunpack.c.l.b16 %v180
    %v593 = vunpack.c.h.b16 %v180
    %v594 = vunpack.c.l.b16 %v181
    %v595 = vunpack.c.h.b16 %v181
    %v596 = vunpack.c.l.b16 %v182
    %v597 = vunpack.c.h.b16 %v182
    %v598 = vunpack.c.l.b16 %v183
    %v599 = vunpack.c.h.b16 %v183
    %v600 = vunpack.c.l.b16 %v184
    %v601 = vunpack.c.h.b16 %v184
    %v602 = vunpack.c.l.b16 %v185
    %v603 = vunpack.c.h.b16 %v185
    %v604 = vunpack.c.l.b16 %v186
    %v605 = vunpack.c.h.b16 %v186
    %v606 = vunpack.c.l.b16 %v187
    %v607 = vunpack.c.h.b16 %v187
    %v608 = vunpack.c.l.b16 %v188
    %v609 = vunpack.c.h.b16 %v188
    %v610 = vunpack.c.l.b16 %v189
    %v611 = vunpack.c.h.b16 %v189
    %v612 = vunpack.c.l.b16 %v190
    %v613 = vunpack.c.h.b16 %v190
    %v614 = vunpack.c.l.b16 %v191
    %v615 = vunpack.c.h.b16 %v191
    %v616 = vunpack.c.l.b16 %v192
    %v617 = vunpack.c.h.b16 %v192
    %v618 = vunpack.c.l.b16 %v193
    %v619 = vunpack.c.h.b16 %v193
    %v620 = vpack.c.b16 %v368, %v364
    %v621 = vpack.c.b16 %v369, %v365
    %v622 = vpack.c.b16 %v370, %v366
    %v623 = vpack.c.b16 %v371, %v367
    %v624 = vpack.c.b16 %v376, %v372
    %v625 = vpack.c.b16 %v377, %v373
    %v626 = vpack.c.b16 %v378, %v374
    %v627 = vpack.c.b16 %v379, %v375
    %v628 = vpack.c.b16 %v384, %v380
    %v629 = vpack.c.b16 %v385, %v381
    %v630 = vpack.c.b16 %v386, %v382
    %v631 = vpack.c.b16 %v387, %v383
    %v632 = vpack.c.b16 %v392, %v388
    %v633 = vpack.c.b16 %v393, %v389
    %v634 = vpack.c.b16 %v394, %v390
    %v635 = vpack.c.b16 %v395, %v391
    %v636 = vpack.c.b16 %v400, %v396
    %v637 = vpack.c.b16 %v401, %v397
    %v638 = vpack.c.b16 %v402, %v398
    %v639 = vpack.c.b16 %v403, %v399
    %v640 = vpack.c.b16 %v408, %v404
    %v641 = vpack.c.b16 %v409, %v405
    %v642 = vpack.c.b16 %v410, %v406
    %v643 = vpack.c.b16 %v411, %v407
    %v644 = vpack.c.b16 %v416, %v412
    %v645 = vpack.c.b16 %v417, %v413
    %v646 = vpack.c.b16 %v418, %v414
    %v647 = vpack.c.b16 %v419, %v415
    %v648 = vpack.c.b16 %v424, %v420
    %v649 = vpack.c.b16 %v425, %v421
    %v650 = vpack.c.b16 %v426, %v422
    %v651 = vpack.c.b16 %v427, %v423
    %v652 = vpack.c.b16 %v432, %v428
    %v653 = vpack.c.b16 %v433, %v429
    %v654 = vpack.c.b16 %v434, %v430
    %v655 = vpack.c.b16 %v435, %v431
    %v656 = vpack.c.b16 %v440, %v436
    %v657 = vpack.c.b16 %v441, %v437
    %v658 = vpack.c.b16 %v442, %v438
    %v659 = vpack.c.b16 %v443, %v439
    %v660 = vpack.c.b16 %v448, %v444
    %v661 = vpack.c.b16 %v449, %v445
    %v662 = vpack.c.b16 %v450, %v446
    %v663 = vpack.c.b16 %v451, %v447
    %v664 = vpack.c.b16 %v456, %v452
    %v665 = vpack.c.b16 %v457, %v453
    %v666 = vpack.c.b16 %v458, %v454
    %v667 = vpack.c.b16 %v459, %v455
    %v668 = vpack.c.b16 %v464, %v460
    %v669 = vpack.c.b16 %v465, %v461
    %v670 = vpack.c.b16 %v466, %v462
    %v671 = vpack.c.b16 %v467, %v463
    %v672 = vpack.c.b16 %v472, %v468
    %v673 = vpack.c.b16 %v473, %v469
    %v674 = vpack.c.b16 %v474, %v470
    %v675 = vpack.c.b16 %v475, %v471
    %v676 = vpack.c.b16 %v480, %v476
    %v677 = vpack.c.b16 %v481, %v477
    %v678 = vpack.c.b16 %v482, %v478
    %v679 = vpack.c.b16 %v483, %v479
    %v680 = vpack.c.b16 %v488, %v484
    %v681 = vpack.c.b16 %v489, %v485
    %v682 = vpack.c.b16 %v490, %v486
    %v683 = vpack.c.b16 %v491, %v487
    %v684 = vpack.c.b16 %v496, %v492
    %v685 = vpack.c.b16 %v497, %v493
    %v686 = vpack.c.b16 %v498, %v494
    %v687 = vpack.c.b16 %v499, %v495
    %v688 = vpack.c.b16 %v504, %v500
    %v689 = vpack.c.b16 %v505, %v501
    %v690 = vpack.c.b16 %v506, %v502
    %v691 = vpack.c.b16 %v507, %v503
    %v692 = vpack.c.b16 %v512, %v508
    %v693 = vpack.c.b16 %v513, %v509
    %v694 = vpack.c.b16 %v514, %v510
    %v695 = vpack.c.b16 %v515, %v511
    %v696 = vpack.c.b16 %v520, %v516
    %v697 = vpack.c.b16 %v521, %v517
    %v698 = vpack.c.b16 %v522, %v518
    %v699 = vpack.c.b16 %v523, %v519
    %v700 = vpack.c.b16 %v528, %v524
    %v701 = vpack.c.b16 %v529, %v525
    %v702 = vpack.c.b16 %v530, %v526
    %v703 = vpack.c.b16 %v531, %v527
    %v704 = vpack.c.b16 %v536, %v532
    %v705 = vpack.c.b16 %v537, %v533
    %v706 = vpack.c.b16 %v538, %v534
    %v707 = vpack.c.b16 %v539, %v535
    %v708 = vpack.c.b16 %v544, %v540
    %v709 = vpack.c.b16 %v545, %v541
    %v710 = vpack.c.b16 %v546, %v542
    %v711 = vpack.c.b16 %v547, %v543
    %v712 = vpack.c.b16 %v552, %v548
    %v713 = vpack.c.b16 %v553, %v549
    %v714 = vpack.c.b16 %v554, %v550
    %v715 = vpack.c.b16 %v555, %v551
    %v716 = vpack.c.b16 %v560, %v556
    %v717 = vpack.c.b16 %v561, %v557
    %v718 = vpack.c.b16 %v562, %v558
    %v719 = vpack.c.b16 %v563, %v559
    %v720 = vpack.c.b16 %v568, %v564
    %v721 = vpack.c.b16 %v569, %v565
    %v722 = vpack.c.b16 %v570, %v566
    %v723 = vpack.c.b16 %v571, %v567
    %v724 = vpack.c.b16 %v576, %v572
    %v725 = vpack.c.b16 %v577, %v573
    %v726 = vpack.c.b16 %v578, %v574
    %v727 = vpack.c.b16 %v579, %v575
    %v728 = vpack.c.b16 %v584, %v580
    %v729 = vpack.c.b16 %v585, %v581
    %v730 = vpack.c.b16 %v586, %v582
    %v731 = vpack.c.b16 %v587, %v583
    %v732 = vpack.c.b16 %v592, %v588
    %v733 = vpack.c.b16 %v593, %v589
    %v734 = vpack.c.b16 %v594, %v590
    %v735 = vpack.c.b16 %v595, %v591
    %v736 = vpack.c.b16 %v600, %v596
    %v737 = vpack.c.b16 %v601, %v597
    %v738 = vpack.c.b16 %v602, %v598
    %v739 = vpack.c.b16 %v603, %v599
    %v740 = vpack.c.b16 %v608, %v604
    %v741 = vpack.c.b16 %v609, %v605
    %v742 = vpack.c.b16 %v610, %v606
    %v743 = vpack.c.b16 %v611, %v607
    %v744 = vpack.c.b16 %v616, %v612
    %v745 = vpack.c.b16 %v617, %v613
    %v746 = vpack.c.b16 %v618, %v614
    %v747 = vpack.c.b16 %v619, %v615
    %876 = vmatprep.subr.bf16.mxu0 %v621
    %877 = vmatpush1.bf16.msra.mxu0 %v620
    %878 = vmatprep.subr.bf16.mxu0 %v625
    %879 = vmatpush1.bf16.msra.mxu0 %v624
    %880 = vmatprep.subr.bf16.mxu0 %v629
    %881 = vmatpush1.bf16.msra.mxu0 %v628
    %882 = vmatprep.subr.bf16.mxu0 %v633
    %883 = vmatpush1.bf16.msra.mxu0 %v632
    %884 = vmatprep.subr.bf16.mxu0 %v637
    %885 = vmatpush1.bf16.msra.mxu0 %v636
    %886 = vmatprep.subr.bf16.mxu0 %v641
    %887 = vmatpush1.bf16.msra.mxu0 %v640
    %888 = vmatprep.subr.bf16.mxu0 %v645
    %889 = vmatpush1.bf16.msra.mxu0 %v644
    %890 = vmatprep.subr.bf16.mxu0 %v649
    %891 = vmatpush1.bf16.msra.mxu0 %v648
    %892 = vmatprep.subr.bf16.mxu0 %v653
    %893 = vmatpush1.bf16.msra.mxu0 %v652
    %894 = vmatprep.subr.bf16.mxu0 %v657
    %895 = vmatpush1.bf16.msra.mxu0 %v656
    %896 = vmatprep.subr.bf16.mxu0 %v661
    %897 = vmatpush1.bf16.msra.mxu0 %v660
    %898 = vmatprep.subr.bf16.mxu0 %v665
    %899 = vmatpush1.bf16.msra.mxu0 %v664
    %900 = vmatprep.subr.bf16.mxu0 %v669
    %901 = vmatpush1.bf16.msra.mxu0 %v668
    %902 = vmatprep.subr.bf16.mxu0 %v673
    %903 = vmatpush1.bf16.msra.mxu0 %v672
    %904 = vmatprep.subr.bf16.mxu0 %v677
    %905 = vmatpush1.bf16.msra.mxu0 %v676
    %906 = vmatprep.subr.bf16.mxu0 %v681
    %907 = vmatpush1.bf16.msra.mxu0 %v680
    %908 = vmatprep.mubr.bf16.mxu0 %v229
    %909 = vmatmul.mubr.bf16.gmra.mrb[0].mxu0 %v228
    %v910 = vpop.f32.mrb[0].mxu0
    %v911 = vadd.f32 %v199, %v910
    %v912 = vpop.f32.mrb[0].mxu0
    %v913 = vadd.f32 %v203, %v912
    %v914 = vpop.f32.mrb[0].mxu0
    %v915 = vadd.f32 %v199, %v914
    %v916 = vpop.f32.mrb[0].mxu0
    %v917 = vadd.f32 %v203, %v916
    %918 = vdwg.mxu0
    %919 = vmatprep.subr.bf16.mxu0 %v685
    %920 = vmatpush1.bf16.msra.mxu0 %v684
    %921 = vmatprep.subr.bf16.mxu0 %v689
    %922 = vmatpush1.bf16.msra.mxu0 %v688
    %923 = vmatprep.subr.bf16.mxu0 %v693
    %924 = vmatpush1.bf16.msra.mxu0 %v692
    %925 = vmatprep.subr.bf16.mxu0 %v697
    %926 = vmatpush1.bf16.msra.mxu0 %v696
    %927 = vmatprep.subr.bf16.mxu0 %v701
    %928 = vmatpush1.bf16.msra.mxu0 %v700
    %929 = vmatprep.subr.bf16.mxu0 %v705
    %930 = vmatpush1.bf16.msra.mxu0 %v704
    %931 = vmatprep.subr.bf16.mxu0 %v709
    %932 = vmatpush1.bf16.msra.mxu0 %v708
    %933 = vmatprep.subr.bf16.mxu0 %v713
    %934 = vmatpush1.bf16.msra.mxu0 %v712
    %935 = vmatprep.subr.bf16.mxu0 %v717
    %936 = vmatpush1.bf16.msra.mxu0 %v716
    %937 = vmatprep.subr.bf16.mxu0 %v721
    %938 = vmatpush1.bf16.msra.mxu0 %v720
    %939 = vmatprep.subr.bf16.mxu0 %v725
    %940 = vmatpush1.bf16.msra.mxu0 %v724
    %941 = vmatprep.subr.bf16.mxu0 %v729
    %942 = vmatpush1.bf16.msra.mxu0 %v728
    %943 = vmatprep.subr.bf16.mxu0 %v733
    %944 = vmatpush1.bf16.msra.mxu0 %v732
    %945 = vmatprep.subr.bf16.mxu0 %v737
    %946 = vmatpush1.bf16.msra.mxu0 %v736
    %947 = vmatprep.subr.bf16.mxu0 %v741
    %948 = vmatpush1.bf16.msra.mxu0 %v740
    %949 = vmatprep.subr.bf16.mxu0 %v745
    %950 = vmatpush1.bf16.msra.mxu0 %v744
    %951 = vmatprep.mubr.bf16.mxu0 %v231
    %952 = vmatmul.mubr.bf16.gmra.mrb[0].mxu0 %v230
    %v953 = vpop.f32.mrb[0].mxu0
    %v954 = vadd.f32 %v911, %v953
    %v955 = vpop.f32.mrb[0].mxu0
    %v956 = vadd.f32 %v913, %v955
    %v957 = vpop.f32.mrb[0].mxu0
    %v958 = vadd.f32 %v915, %v957
    %v959 = vpop.f32.mrb[0].mxu0
    %v960 = vadd.f32 %v917, %v959
    %961 = vdwg.mxu0
    %962 = vmatprep.subr.bf16.mxu0 %v623
    %963 = vmatpush1.bf16.msra.mxu0 %v622
    %964 = vmatprep.subr.bf16.mxu0 %v627
    %965 = vmatpush1.bf16.msra.mxu0 %v626
    %966 = vmatprep.subr.bf16.mxu0 %v631
    %967 = vmatpush1.bf16.msra.mxu0 %v630
    %968 = vmatprep.subr.bf16.mxu0 %v635
    %969 = vmatpush1.bf16.msra.mxu0 %v634
    %970 = vmatprep.subr.bf16.mxu0 %v639
    %971 = vmatpush1.bf16.msra.mxu0 %v638
    %972 = vmatprep.subr.bf16.mxu0 %v643
    %973 = vmatpush1.bf16.msra.mxu0 %v642
    %974 = vmatprep.subr.bf16.mxu0 %v647
    %975 = vmatpush1.bf16.msra.mxu0 %v646
    %976 = vmatprep.subr.bf16.mxu0 %v651
    %977 = vmatpush1.bf16.msra.mxu0 %v650
    %978 = vmatprep.subr.bf16.mxu0 %v655
    %979 = vmatpush1.bf16.msra.mxu0 %v654
    %980 = vmatprep.subr.bf16.mxu0 %v659
    %981 = vmatpush1.bf16.msra.mxu0 %v658
    %982 = vmatprep.subr.bf16.mxu0 %v663
    %983 = vmatpush1.bf16.msra.mxu0 %v662
    %984 = vmatprep.subr.bf16.mxu0 %v667
    %985 = vmatpush1.bf16.msra.mxu0 %v666
    %986 = vmatprep.subr.bf16.mxu0 %v671
    %987 = vmatpush1.bf16.msra.mxu0 %v670
    %988 = vmatprep.subr.bf16.mxu0 %v675
    %989 = vmatpush1.bf16.msra.mxu0 %v674
    %990 = vmatprep.subr.bf16.mxu0 %v679
    %991 = vmatpush1.bf16.msra.mxu0 %v678
    %992 = vmatprep.subr.bf16.mxu0 %v683
    %993 = vmatpush1.bf16.msra.mxu0 %v682
    %994 = vmatprep.mubr.bf16.mxu0 %v229
    %995 = vmatmul.mubr.bf16.gmra.mrb[0].mxu0 %v228
    %v996 = vpop.f32.mrb[0].mxu0
    %v997 = vadd.f32 %v207, %v996
    %v998 = vpop.f32.mrb[0].mxu0
    %v999 = vadd.f32 %v211, %v998
    %v1000 = vpop.f32.mrb[0].mxu0
    %v1001 = vadd.f32 %v207, %v1000
    %v1002 = vpop.f32.mrb[0].mxu0
    %v1003 = vadd.f32 %v211, %v1002
    %1004 = vdwg.mxu0
    %1005 = vmatprep.subr.bf16.mxu0 %v687
    %1006 = vmatpush1.bf16.msra.mxu0 %v686
    %1007 = vmatprep.subr.bf16.mxu0 %v691
    %1008 = vmatpush1.bf16.msra.mxu0 %v690
    %1009 = vmatprep.subr.bf16.mxu0 %v695
    %1010 = vmatpush1.bf16.msra.mxu0 %v694
    %1011 = vmatprep.subr.bf16.mxu0 %v699
    %1012 = vmatpush1.bf16.msra.mxu0 %v698
    %1013 = vmatprep.subr.bf16.mxu0 %v703
    %1014 = vmatpush1.bf16.msra.mxu0 %v702
    %1015 = vmatprep.subr.bf16.mxu0 %v707
    %1016 = vmatpush1.bf16.msra.mxu0 %v706
    %1017 = vmatprep.subr.bf16.mxu0 %v711
    %1018 = vmatpush1.bf16.msra.mxu0 %v710
    %1019 = vmatprep.subr.bf16.mxu0 %v715
    %1020 = vmatpush1.bf16.msra.mxu0 %v714
    %1021 = vmatprep.subr.bf16.mxu0 %v719
    %1022 = vmatpush1.bf16.msra.mxu0 %v718
    %1023 = vmatprep.subr.bf16.mxu0 %v723
    %1024 = vmatpush1.bf16.msra.mxu0 %v722
    %1025 = vmatprep.subr.bf16.mxu0 %v727
    %1026 = vmatpush1.bf16.msra.mxu0 %v726
    %1027 = vmatprep.subr.bf16.mxu0 %v731
    %1028 = vmatpush1.bf16.msra.mxu0 %v730
    %1029 = vmatprep.subr.bf16.mxu0 %v735
    %1030 = vmatpush1.bf16.msra.mxu0 %v734
    %1031 = vmatprep.subr.bf16.mxu0 %v739
    %1032 = vmatpush1.bf16.msra.mxu0 %v738
    %1033 = vmatprep.subr.bf16.mxu0 %v743
    %1034 = vmatpush1.bf16.msra.mxu0 %v742
    %1035 = vmatprep.subr.bf16.mxu0 %v747
    %1036 = vmatpush1.bf16.msra.mxu0 %v746
    %1037 = vmatprep.mubr.bf16.mxu0 %v231
    %1038 = vmatmul.mubr.bf16.gmra.mrb[0].mxu0 %v230
    %v1039 = vpop.f32.mrb[0].mxu0
    %v1040 = vadd.f32 %v997, %v1039
    %v1041 = vpop.f32.mrb[0].mxu0
    %v1042 = vadd.f32 %v999, %v1041
    %v1043 = vpop.f32.mrb[0].mxu0
    %v1044 = vadd.f32 %v1001, %v1043
    %v1045 = vpop.f32.mrb[0].mxu0
    %v1046 = vadd.f32 %v1003, %v1045
    %1047 = vdwg.mxu0
    %v1048 = vmax.f32 %v954, 0.0
    %v1049 = vmax.f32 %v956, 0.0
    %v1050 = vmax.f32 %v1040, 0.0
    %v1051 = vmax.f32 %v1042, 0.0
    %v1052 = vmax.f32 %v958, 0.0
    %v1053 = vmax.f32 %v960, 0.0
    %v1054 = vmax.f32 %v1044, 0.0
    %v1055 = vmax.f32 %v1046, 0.0
    %v1056 = vpack.c.bf16 %v1052, %v1048
    %v1057 = vpack.c.bf16 %v1053, %v1049
    %v1058 = vpack.c.bf16 %v1054, %v1050
    %v1059 = vpack.c.bf16 %v1055, %v1051
    %v1060 = vld [vmem:[#allocation7] sm:$0xff]
    %v1061 = vld [vmem:[#allocation7 + $0x8] sm:$0xff]
    %v1062 = vld [vmem:[#allocation7 + $0x10] sm:$0xff]
    %v1063 = vld [vmem:[#allocation7 + $0x18] sm:$0xff]
    %v1064 = vld [vmem:[#allocation7 + $0x20] sm:$0xff]
    %v1065 = vld [vmem:[#allocation7 + $0x28] sm:$0xff]
    %v1066 = vld [vmem:[#allocation7 + $0x30] sm:$0xff]
    %v1067 = vld [vmem:[#allocation7 + $0x38] sm:$0xff]
    %v1068 = vld [vmem:[#allocation7 + $0x40] sm:$0xff]
    %v1069 = vld [vmem:[#allocation7 + $0x48] sm:$0xff]
    %v1070 = vld [vmem:[#allocation7 + $0x50] sm:$0xff]
    %v1071 = vld [vmem:[#allocation7 + $0x58] sm:$0xff]
    %v1072 = vld [vmem:[#allocation7 + $0x60] sm:$0xff]
    %v1073 = vld [vmem:[#allocation7 + $0x68] sm:$0xff]
    %v1074 = vld [vmem:[#allocation7 + $0x70] sm:$0xff]
    %v1075 = vld [vmem:[#allocation7 + $0x78] sm:$0xff]
    %v1076 = vld [vmem:[#allocation7 + $0x80] sm:$0xff]
    %v1077 = vld [vmem:[#allocation7 + $0x88] sm:$0xff]
    %v1078 = vld [vmem:[#allocation7 + $0x90] sm:$0xff]
    %v1079 = vld [vmem:[#allocation7 + $0x98] sm:$0xff]
    %v1080 = vld [vmem:[#allocation7 + $0xa0] sm:$0xff]
    %v1081 = vld [vmem:[#allocation7 + $0xa8] sm:$0xff]
    %v1082 = vld [vmem:[#allocation7 + $0xb0] sm:$0xff]
    %v1083 = vld [vmem:[#allocation7 + $0xb8] sm:$0xff]
    %v1084 = vld [vmem:[#allocation7 + $0xc0] sm:$0xff]
    %v1085 = vld [vmem:[#allocation7 + $0xc8] sm:$0xff]
    %v1086 = vld [vmem:[#allocation7 + $0xd0] sm:$0xff]
    %v1087 = vld [vmem:[#allocation7 + $0xd8] sm:$0xff]
    %v1088 = vld [vmem:[#allocation7 + $0xe0] sm:$0xff]
    %v1089 = vld [vmem:[#allocation7 + $0xe8] sm:$0xff]
    %v1090 = vld [vmem:[#allocation7 + $0xf0] sm:$0xff]
    %v1091 = vld [vmem:[#allocation7 + $0xf8] sm:$0xff]
    %v1092 = vld [vmem:[#allocation7 + $0x100] sm:$0xff]
    %v1093 = vld [vmem:[#allocation7 + $0x108] sm:$0xff]
    %v1094 = vld [vmem:[#allocation7 + $0x110] sm:$0xff]
    %v1095 = vld [vmem:[#allocation7 + $0x118] sm:$0xff]
    %v1096 = vld [vmem:[#allocation7 + $0x120] sm:$0xff]
    %v1097 = vld [vmem:[#allocation7 + $0x128] sm:$0xff]
    %v1098 = vld [vmem:[#allocation7 + $0x130] sm:$0xff]
    %v1099 = vld [vmem:[#allocation7 + $0x138] sm:$0xff]
    %v1100 = vld [vmem:[#allocation7 + $0x140] sm:$0xff]
    %v1101 = vld [vmem:[#allocation7 + $0x148] sm:$0xff]
    %v1102 = vld [vmem:[#allocation7 + $0x150] sm:$0xff]
    %v1103 = vld [vmem:[#allocation7 + $0x158] sm:$0xff]
    %v1104 = vld [vmem:[#allocation7 + $0x160] sm:$0xff]
    %v1105 = vld [vmem:[#allocation7 + $0x168] sm:$0xff]
    %v1106 = vld [vmem:[#allocation7 + $0x170] sm:$0xff]
    %v1107 = vld [vmem:[#allocation7 + $0x178] sm:$0xff]
    %v1108 = vld [vmem:[#allocation7 + $0x180] sm:$0xff]
    %v1109 = vld [vmem:[#allocation7 + $0x188] sm:$0xff]
    %v1110 = vld [vmem:[#allocation7 + $0x190] sm:$0xff]
    %v1111 = vld [vmem:[#allocation7 + $0x198] sm:$0xff]
    %v1112 = vld [vmem:[#allocation7 + $0x1a0] sm:$0xff]
    %v1113 = vld [vmem:[#allocation7 + $0x1a8] sm:$0xff]
    %v1114 = vld [vmem:[#allocation7 + $0x1b0] sm:$0xff]
    %v1115 = vld [vmem:[#allocation7 + $0x1b8] sm:$0xff]
    %v1116 = vld [vmem:[#allocation7 + $0x1c0] sm:$0xff]
    %v1117 = vld [vmem:[#allocation7 + $0x1c8] sm:$0xff]
    %v1118 = vld [vmem:[#allocation7 + $0x1d0] sm:$0xff]
    %v1119 = vld [vmem:[#allocation7 + $0x1d8] sm:$0xff]
    %v1120 = vld [vmem:[#allocation7 + $0x1e0] sm:$0xff]
    %v1121 = vld [vmem:[#allocation7 + $0x1e8] sm:$0xff]
    %v1122 = vld [vmem:[#allocation7 + $0x1f0] sm:$0xff]
    %v1123 = vld [vmem:[#allocation7 + $0x1f8] sm:$0xff]
    %v1124 = vld [vmem:[#allocation7 + $0x200] sm:$0xff]
    %v1125 = vld [vmem:[#allocation7 + $0x208] sm:$0xff]
    %v1126 = vld [vmem:[#allocation7 + $0x210] sm:$0xff]
    %v1127 = vld [vmem:[#allocation7 + $0x218] sm:$0xff]
    %v1128 = vld [vmem:[#allocation7 + $0x220] sm:$0xff]
    %v1129 = vld [vmem:[#allocation7 + $0x228] sm:$0xff]
    %v1130 = vld [vmem:[#allocation7 + $0x230] sm:$0xff]
    %v1131 = vld [vmem:[#allocation7 + $0x238] sm:$0xff]
    %v1132 = vld [vmem:[#allocation7 + $0x240] sm:$0xff]
    %v1133 = vld [vmem:[#allocation7 + $0x248] sm:$0xff]
    %v1134 = vld [vmem:[#allocation7 + $0x250] sm:$0xff]
    %v1135 = vld [vmem:[#allocation7 + $0x258] sm:$0xff]
    %v1136 = vld [vmem:[#allocation7 + $0x260] sm:$0xff]
    %v1137 = vld [vmem:[#allocation7 + $0x268] sm:$0xff]
    %v1138 = vld [vmem:[#allocation7 + $0x270] sm:$0xff]
    %v1139 = vld [vmem:[#allocation7 + $0x278] sm:$0xff]
    %v1140 = vld [vmem:[#allocation7 + $0x280] sm:$0xff]
    %v1141 = vld [vmem:[#allocation7 + $0x288] sm:$0xff]
    %v1142 = vld [vmem:[#allocation7 + $0x290] sm:$0xff]
    %v1143 = vld [vmem:[#allocation7 + $0x298] sm:$0xff]
    %v1144 = vld [vmem:[#allocation7 + $0x2a0] sm:$0xff]
    %v1145 = vld [vmem:[#allocation7 + $0x2a8] sm:$0xff]
    %v1146 = vld [vmem:[#allocation7 + $0x2b0] sm:$0xff]
    %v1147 = vld [vmem:[#allocation7 + $0x2b8] sm:$0xff]
    %v1148 = vld [vmem:[#allocation7 + $0x2c0] sm:$0xff]
    %v1149 = vld [vmem:[#allocation7 + $0x2c8] sm:$0xff]
    %v1150 = vld [vmem:[#allocation7 + $0x2d0] sm:$0xff]
    %v1151 = vld [vmem:[#allocation7 + $0x2d8] sm:$0xff]
    %v1152 = vld [vmem:[#allocation7 + $0x2e0] sm:$0xff]
    %v1153 = vld [vmem:[#allocation7 + $0x2e8] sm:$0xff]
    %v1154 = vld [vmem:[#allocation7 + $0x2f0] sm:$0xff]
    %v1155 = vld [vmem:[#allocation7 + $0x2f8] sm:$0xff]
    %v1156 = vld [vmem:[#allocation7 + $0x300] sm:$0xff]
    %v1157 = vld [vmem:[#allocation7 + $0x308] sm:$0xff]
    %v1158 = vld [vmem:[#allocation7 + $0x310] sm:$0xff]
    %v1159 = vld [vmem:[#allocation7 + $0x318] sm:$0xff]
    %v1160 = vld [vmem:[#allocation7 + $0x320] sm:$0xff]
    %v1161 = vld [vmem:[#allocation7 + $0x328] sm:$0xff]
    %v1162 = vld [vmem:[#allocation7 + $0x330] sm:$0xff]
    %v1163 = vld [vmem:[#allocation7 + $0x338] sm:$0xff]
    %v1164 = vld [vmem:[#allocation7 + $0x340] sm:$0xff]
    %v1165 = vld [vmem:[#allocation7 + $0x348] sm:$0xff]
    %v1166 = vld [vmem:[#allocation7 + $0x350] sm:$0xff]
    %v1167 = vld [vmem:[#allocation7 + $0x358] sm:$0xff]
    %v1168 = vld [vmem:[#allocation7 + $0x360] sm:$0xff]
    %v1169 = vld [vmem:[#allocation7 + $0x368] sm:$0xff]
    %v1170 = vld [vmem:[#allocation7 + $0x370] sm:$0xff]
    %v1171 = vld [vmem:[#allocation7 + $0x378] sm:$0xff]
    %v1172 = vld [vmem:[#allocation7 + $0x380] sm:$0xff]
    %v1173 = vld [vmem:[#allocation7 + $0x388] sm:$0xff]
    %v1174 = vld [vmem:[#allocation7 + $0x390] sm:$0xff]
    %v1175 = vld [vmem:[#allocation7 + $0x398] sm:$0xff]
    %v1176 = vld [vmem:[#allocation7 + $0x3a0] sm:$0xff]
    %v1177 = vld [vmem:[#allocation7 + $0x3a8] sm:$0xff]
    %v1178 = vld [vmem:[#allocation7 + $0x3b0] sm:$0xff]
    %v1179 = vld [vmem:[#allocation7 + $0x3b8] sm:$0xff]
    %v1180 = vld [vmem:[#allocation7 + $0x3c0] sm:$0xff]
    %v1181 = vld [vmem:[#allocation7 + $0x3c8] sm:$0xff]
    %v1182 = vld [vmem:[#allocation7 + $0x3d0] sm:$0xff]
    %v1183 = vld [vmem:[#allocation7 + $0x3d8] sm:$0xff]
    %v1184 = vld [vmem:[#allocation7 + $0x3e0] sm:$0xff]
    %v1185 = vld [vmem:[#allocation7 + $0x3e8] sm:$0xff]
    %v1186 = vld [vmem:[#allocation7 + $0x3f0] sm:$0xff]
    %v1187 = vld [vmem:[#allocation7 + $0x3f8] sm:$0xff]
    %v1188 = vld [vmem:[%s4] sm:$0xf]
    %v1190 = vlaneseq
    %v1191 = vshrl.u32 %v1190, 7
    %v1192 = vsub.s32 0, %v1191
    %v1193 = vrot.slane %v1188, %v1192
    %v1194 = vlaneseq
    %v1195 = vshrl.u32 %v1194, 7
    %v1196 = vsub.s32 1, %v1195
    %v1197 = vrot.slane %v1188, %v1196
    %v1198 = vlaneseq
    %v1199 = vshrl.u32 %v1198, 7
    %v1200 = vsub.s32 2, %v1199
    %v1201 = vrot.slane %v1188, %v1200
    %v1202 = vlaneseq
    %v1203 = vshrl.u32 %v1202, 7
    %v1204 = vsub.s32 3, %v1203
    %v1205 = vrot.slane %v1188, %v1204
    %v1338 = vunpack.c.l.b16 %v1060
    %v1339 = vunpack.c.h.b16 %v1060
    %v1340 = vunpack.c.l.b16 %v1061
    %v1341 = vunpack.c.h.b16 %v1061
    %v1342 = vunpack.c.l.b16 %v1062
    %v1343 = vunpack.c.h.b16 %v1062
    %v1344 = vunpack.c.l.b16 %v1063
    %v1345 = vunpack.c.h.b16 %v1063
    %v1346 = vunpack.c.l.b16 %v1064
    %v1347 = vunpack.c.h.b16 %v1064
    %v1348 = vunpack.c.l.b16 %v1065
    %v1349 = vunpack.c.h.b16 %v1065
    %v1350 = vunpack.c.l.b16 %v1066
    %v1351 = vunpack.c.h.b16 %v1066
    %v1352 = vunpack.c.l.b16 %v1067
    %v1353 = vunpack.c.h.b16 %v1067
    %v1354 = vunpack.c.l.b16 %v1068
    %v1355 = vunpack.c.h.b16 %v1068
    %v1356 = vunpack.c.l.b16 %v1069
    %v1357 = vunpack.c.h.b16 %v1069
    %v1358 = vunpack.c.l.b16 %v1070
    %v1359 = vunpack.c.h.b16 %v1070
    %v1360 = vunpack.c.l.b16 %v1071
    %v1361 = vunpack.c.h.b16 %v1071
    %v1362 = vunpack.c.l.b16 %v1072
    %v1363 = vunpack.c.h.b16 %v1072
    %v1364 = vunpack.c.l.b16 %v1073
    %v1365 = vunpack.c.h.b16 %v1073
    %v1366 = vunpack.c.l.b16 %v1074
    %v1367 = vunpack.c.h.b16 %v1074
    %v1368 = vunpack.c.l.b16 %v1075
    %v1369 = vunpack.c.h.b16 %v1075
    %v1370 = vunpack.c.l.b16 %v1076
    %v1371 = vunpack.c.h.b16 %v1076
    %v1372 = vunpack.c.l.b16 %v1077
    %v1373 = vunpack.c.h.b16 %v1077
    %v1374 = vunpack.c.l.b16 %v1078
    %v1375 = vunpack.c.h.b16 %v1078
    %v1376 = vunpack.c.l.b16 %v1079
    %v1377 = vunpack.c.h.b16 %v1079
    %v1378 = vunpack.c.l.b16 %v1080
    %v1379 = vunpack.c.h.b16 %v1080
    %v1380 = vunpack.c.l.b16 %v1081
    %v1381 = vunpack.c.h.b16 %v1081
    %v1382 = vunpack.c.l.b16 %v1082
    %v1383 = vunpack.c.h.b16 %v1082
    %v1384 = vunpack.c.l.b16 %v1083
    %v1385 = vunpack.c.h.b16 %v1083
    %v1386 = vunpack.c.l.b16 %v1084
    %v1387 = vunpack.c.h.b16 %v1084
    %v1388 = vunpack.c.l.b16 %v1085
    %v1389 = vunpack.c.h.b16 %v1085
    %v1390 = vunpack.c.l.b16 %v1086
    %v1391 = vunpack.c.h.b16 %v1086
    %v1392 = vunpack.c.l.b16 %v1087
    %v1393 = vunpack.c.h.b16 %v1087
    %v1394 = vunpack.c.l.b16 %v1088
    %v1395 = vunpack.c.h.b16 %v1088
    %v1396 = vunpack.c.l.b16 %v1089
    %v1397 = vunpack.c.h.b16 %v1089
    %v1398 = vunpack.c.l.b16 %v1090
    %v1399 = vunpack.c.h.b16 %v1090
    %v1400 = vunpack.c.l.b16 %v1091
    %v1401 = vunpack.c.h.b16 %v1091
    %v1402 = vunpack.c.l.b16 %v1092
    %v1403 = vunpack.c.h.b16 %v1092
    %v1404 = vunpack.c.l.b16 %v1093
    %v1405 = vunpack.c.h.b16 %v1093
    %v1406 = vunpack.c.l.b16 %v1094
    %v1407 = vunpack.c.h.b16 %v1094
    %v1408 = vunpack.c.l.b16 %v1095
    %v1409 = vunpack.c.h.b16 %v1095
    %v1410 = vunpack.c.l.b16 %v1096
    %v1411 = vunpack.c.h.b16 %v1096
    %v1412 = vunpack.c.l.b16 %v1097
    %v1413 = vunpack.c.h.b16 %v1097
    %v1414 = vunpack.c.l.b16 %v1098
    %v1415 = vunpack.c.h.b16 %v1098
    %v1416 = vunpack.c.l.b16 %v1099
    %v1417 = vunpack.c.h.b16 %v1099
    %v1418 = vunpack.c.l.b16 %v1100
    %v1419 = vunpack.c.h.b16 %v1100
    %v1420 = vunpack.c.l.b16 %v1101
    %v1421 = vunpack.c.h.b16 %v1101
    %v1422 = vunpack.c.l.b16 %v1102
    %v1423 = vunpack.c.h.b16 %v1102
    %v1424 = vunpack.c.l.b16 %v1103
    %v1425 = vunpack.c.h.b16 %v1103
    %v1426 = vunpack.c.l.b16 %v1104
    %v1427 = vunpack.c.h.b16 %v1104
    %v1428 = vunpack.c.l.b16 %v1105
    %v1429 = vunpack.c.h.b16 %v1105
    %v1430 = vunpack.c.l.b16 %v1106
    %v1431 = vunpack.c.h.b16 %v1106
    %v1432 = vunpack.c.l.b16 %v1107
    %v1433 = vunpack.c.h.b16 %v1107
    %v1434 = vunpack.c.l.b16 %v1108
    %v1435 = vunpack.c.h.b16 %v1108
    %v1436 = vunpack.c.l.b16 %v1109
    %v1437 = vunpack.c.h.b16 %v1109
    %v1438 = vunpack.c.l.b16 %v1110
    %v1439 = vunpack.c.h.b16 %v1110
    %v1440 = vunpack.c.l.b16 %v1111
    %v1441 = vunpack.c.h.b16 %v1111
    %v1442 = vunpack.c.l.b16 %v1112
    %v1443 = vunpack.c.h.b16 %v1112
    %v1444 = vunpack.c.l.b16 %v1113
    %v1445 = vunpack.c.h.b16 %v1113
    %v1446 = vunpack.c.l.b16 %v1114
    %v1447 = vunpack.c.h.b16 %v1114
    %v1448 = vunpack.c.l.b16 %v1115
    %v1449 = vunpack.c.h.b16 %v1115
    %v1450 = vunpack.c.l.b16 %v1116
    %v1451 = vunpack.c.h.b16 %v1116
    %v1452 = vunpack.c.l.b16 %v1117
    %v1453 = vunpack.c.h.b16 %v1117
    %v1454 = vunpack.c.l.b16 %v1118
    %v1455 = vunpack.c.h.b16 %v1118
    %v1456 = vunpack.c.l.b16 %v1119
    %v1457 = vunpack.c.h.b16 %v1119
    %v1458 = vunpack.c.l.b16 %v1120
    %v1459 = vunpack.c.h.b16 %v1120
    %v1460 = vunpack.c.l.b16 %v1121
    %v1461 = vunpack.c.h.b16 %v1121
    %v1462 = vunpack.c.l.b16 %v1122
    %v1463 = vunpack.c.h.b16 %v1122
    %v1464 = vunpack.c.l.b16 %v1123
    %v1465 = vunpack.c.h.b16 %v1123
    %v1466 = vunpack.c.l.b16 %v1124
    %v1467 = vunpack.c.h.b16 %v1124
    %v1468 = vunpack.c.l.b16 %v1125
    %v1469 = vunpack.c.h.b16 %v1125
    %v1470 = vunpack.c.l.b16 %v1126
    %v1471 = vunpack.c.h.b16 %v1126
    %v1472 = vunpack.c.l.b16 %v1127
    %v1473 = vunpack.c.h.b16 %v1127
    %v1474 = vunpack.c.l.b16 %v1128
    %v1475 = vunpack.c.h.b16 %v1128
    %v1476 = vunpack.c.l.b16 %v1129
    %v1477 = vunpack.c.h.b16 %v1129
    %v1478 = vunpack.c.l.b16 %v1130
    %v1479 = vunpack.c.h.b16 %v1130
    %v1480 = vunpack.c.l.b16 %v1131
    %v1481 = vunpack.c.h.b16 %v1131
    %v1482 = vunpack.c.l.b16 %v1132
    %v1483 = vunpack.c.h.b16 %v1132
    %v1484 = vunpack.c.l.b16 %v1133
    %v1485 = vunpack.c.h.b16 %v1133
    %v1486 = vunpack.c.l.b16 %v1134
    %v1487 = vunpack.c.h.b16 %v1134
    %v1488 = vunpack.c.l.b16 %v1135
    %v1489 = vunpack.c.h.b16 %v1135
    %v1490 = vunpack.c.l.b16 %v1136
    %v1491 = vunpack.c.h.b16 %v1136
    %v1492 = vunpack.c.l.b16 %v1137
    %v1493 = vunpack.c.h.b16 %v1137
    %v1494 = vunpack.c.l.b16 %v1138
    %v1495 = vunpack.c.h.b16 %v1138
    %v1496 = vunpack.c.l.b16 %v1139
    %v1497 = vunpack.c.h.b16 %v1139
    %v1498 = vunpack.c.l.b16 %v1140
    %v1499 = vunpack.c.h.b16 %v1140
    %v1500 = vunpack.c.l.b16 %v1141
    %v1501 = vunpack.c.h.b16 %v1141
    %v1502 = vunpack.c.l.b16 %v1142
    %v1503 = vunpack.c.h.b16 %v1142
    %v1504 = vunpack.c.l.b16 %v1143
    %v1505 = vunpack.c.h.b16 %v1143
    %v1506 = vunpack.c.l.b16 %v1144
    %v1507 = vunpack.c.h.b16 %v1144
    %v1508 = vunpack.c.l.b16 %v1145
    %v1509 = vunpack.c.h.b16 %v1145
    %v1510 = vunpack.c.l.b16 %v1146
    %v1511 = vunpack.c.h.b16 %v1146
    %v1512 = vunpack.c.l.b16 %v1147
    %v1513 = vunpack.c.h.b16 %v1147
    %v1514 = vunpack.c.l.b16 %v1148
    %v1515 = vunpack.c.h.b16 %v1148
    %v1516 = vunpack.c.l.b16 %v1149
    %v1517 = vunpack.c.h.b16 %v1149
    %v1518 = vunpack.c.l.b16 %v1150
    %v1519 = vunpack.c.h.b16 %v1150
    %v1520 = vunpack.c.l.b16 %v1151
    %v1521 = vunpack.c.h.b16 %v1151
    %v1522 = vunpack.c.l.b16 %v1152
    %v1523 = vunpack.c.h.b16 %v1152
    %v1524 = vunpack.c.l.b16 %v1153
    %v1525 = vunpack.c.h.b16 %v1153
    %v1526 = vunpack.c.l.b16 %v1154
    %v1527 = vunpack.c.h.b16 %v1154
    %v1528 = vunpack.c.l.b16 %v1155
    %v1529 = vunpack.c.h.b16 %v1155
    %v1530 = vunpack.c.l.b16 %v1156
    %v1531 = vunpack.c.h.b16 %v1156
    %v1532 = vunpack.c.l.b16 %v1157
    %v1533 = vunpack.c.h.b16 %v1157
    %v1534 = vunpack.c.l.b16 %v1158
    %v1535 = vunpack.c.h.b16 %v1158
    %v1536 = vunpack.c.l.b16 %v1159
    %v1537 = vunpack.c.h.b16 %v1159
    %v1538 = vunpack.c.l.b16 %v1160
    %v1539 = vunpack.c.h.b16 %v1160
    %v1540 = vunpack.c.l.b16 %v1161
    %v1541 = vunpack.c.h.b16 %v1161
    %v1542 = vunpack.c.l.b16 %v1162
    %v1543 = vunpack.c.h.b16 %v1162
    %v1544 = vunpack.c.l.b16 %v1163
    %v1545 = vunpack.c.h.b16 %v1163
    %v1546 = vunpack.c.l.b16 %v1164
    %v1547 = vunpack.c.h.b16 %v1164
    %v1548 = vunpack.c.l.b16 %v1165
    %v1549 = vunpack.c.h.b16 %v1165
    %v1550 = vunpack.c.l.b16 %v1166
    %v1551 = vunpack.c.h.b16 %v1166
    %v1552 = vunpack.c.l.b16 %v1167
    %v1553 = vunpack.c.h.b16 %v1167
    %v1554 = vunpack.c.l.b16 %v1168
    %v1555 = vunpack.c.h.b16 %v1168
    %v1556 = vunpack.c.l.b16 %v1169
    %v1557 = vunpack.c.h.b16 %v1169
    %v1558 = vunpack.c.l.b16 %v1170
    %v1559 = vunpack.c.h.b16 %v1170
    %v1560 = vunpack.c.l.b16 %v1171
    %v1561 = vunpack.c.h.b16 %v1171
    %v1562 = vunpack.c.l.b16 %v1172
    %v1563 = vunpack.c.h.b16 %v1172
    %v1564 = vunpack.c.l.b16 %v1173
    %v1565 = vunpack.c.h.b16 %v1173
    %v1566 = vunpack.c.l.b16 %v1174
    %v1567 = vunpack.c.h.b16 %v1174
    %v1568 = vunpack.c.l.b16 %v1175
    %v1569 = vunpack.c.h.b16 %v1175
    %v1570 = vunpack.c.l.b16 %v1176
    %v1571 = vunpack.c.h.b16 %v1176
    %v1572 = vunpack.c.l.b16 %v1177
    %v1573 = vunpack.c.h.b16 %v1177
    %v1574 = vunpack.c.l.b16 %v1178
    %v1575 = vunpack.c.h.b16 %v1178
    %v1576 = vunpack.c.l.b16 %v1179
    %v1577 = vunpack.c.h.b16 %v1179
    %v1578 = vunpack.c.l.b16 %v1180
    %v1579 = vunpack.c.h.b16 %v1180
    %v1580 = vunpack.c.l.b16 %v1181
    %v1581 = vunpack.c.h.b16 %v1181
    %v1582 = vunpack.c.l.b16 %v1182
    %v1583 = vunpack.c.h.b16 %v1182
    %v1584 = vunpack.c.l.b16 %v1183
    %v1585 = vunpack.c.h.b16 %v1183
    %v1586 = vunpack.c.l.b16 %v1184
    %v1587 = vunpack.c.h.b16 %v1184
    %v1588 = vunpack.c.l.b16 %v1185
    %v1589 = vunpack.c.h.b16 %v1185
    %v1590 = vunpack.c.l.b16 %v1186
    %v1591 = vunpack.c.h.b16 %v1186
    %v1592 = vunpack.c.l.b16 %v1187
    %v1593 = vunpack.c.h.b16 %v1187
    %v1594 = vpack.c.b16 %v1342, %v1338
    %v1595 = vpack.c.b16 %v1343, %v1339
    %v1596 = vpack.c.b16 %v1344, %v1340
    %v1597 = vpack.c.b16 %v1345, %v1341
    %v1598 = vpack.c.b16 %v1350, %v1346
    %v1599 = vpack.c.b16 %v1351, %v1347
    %v1600 = vpack.c.b16 %v1352, %v1348
    %v1601 = vpack.c.b16 %v1353, %v1349
    %v1602 = vpack.c.b16 %v1358, %v1354
    %v1603 = vpack.c.b16 %v1359, %v1355
    %v1604 = vpack.c.b16 %v1360, %v1356
    %v1605 = vpack.c.b16 %v1361, %v1357
    %v1606 = vpack.c.b16 %v1366, %v1362
    %v1607 = vpack.c.b16 %v1367, %v1363
    %v1608 = vpack.c.b16 %v1368, %v1364
    %v1609 = vpack.c.b16 %v1369, %v1365
    %v1610 = vpack.c.b16 %v1374, %v1370
    %v1611 = vpack.c.b16 %v1375, %v1371
    %v1612 = vpack.c.b16 %v1376, %v1372
    %v1613 = vpack.c.b16 %v1377, %v1373
    %v1614 = vpack.c.b16 %v1382, %v1378
    %v1615 = vpack.c.b16 %v1383, %v1379
    %v1616 = vpack.c.b16 %v1384, %v1380
    %v1617 = vpack.c.b16 %v1385, %v1381
    %v1618 = vpack.c.b16 %v1390, %v1386
    %v1619 = vpack.c.b16 %v1391, %v1387
    %v1620 = vpack.c.b16 %v1392, %v1388
    %v1621 = vpack.c.b16 %v1393, %v1389
    %v1622 = vpack.c.b16 %v1398, %v1394
    %v1623 = vpack.c.b16 %v1399, %v1395
    %v1624 = vpack.c.b16 %v1400, %v1396
    %v1625 = vpack.c.b16 %v1401, %v1397
    %v1626 = vpack.c.b16 %v1406, %v1402
    %v1627 = vpack.c.b16 %v1407, %v1403
    %v1628 = vpack.c.b16 %v1408, %v1404
    %v1629 = vpack.c.b16 %v1409, %v1405
    %v1630 = vpack.c.b16 %v1414, %v1410
    %v1631 = vpack.c.b16 %v1415, %v1411
    %v1632 = vpack.c.b16 %v1416, %v1412
    %v1633 = vpack.c.b16 %v1417, %v1413
    %v1634 = vpack.c.b16 %v1422, %v1418
    %v1635 = vpack.c.b16 %v1423, %v1419
    %v1636 = vpack.c.b16 %v1424, %v1420
    %v1637 = vpack.c.b16 %v1425, %v1421
    %v1638 = vpack.c.b16 %v1430, %v1426
    %v1639 = vpack.c.b16 %v1431, %v1427
    %v1640 = vpack.c.b16 %v1432, %v1428
    %v1641 = vpack.c.b16 %v1433, %v1429
    %v1642 = vpack.c.b16 %v1438, %v1434
    %v1643 = vpack.c.b16 %v1439, %v1435
    %v1644 = vpack.c.b16 %v1440, %v1436
    %v1645 = vpack.c.b16 %v1441, %v1437
    %v1646 = vpack.c.b16 %v1446, %v1442
    %v1647 = vpack.c.b16 %v1447, %v1443
    %v1648 = vpack.c.b16 %v1448, %v1444
    %v1649 = vpack.c.b16 %v1449, %v1445
    %v1650 = vpack.c.b16 %v1454, %v1450
    %v1651 = vpack.c.b16 %v1455, %v1451
    %v1652 = vpack.c.b16 %v1456, %v1452
    %v1653 = vpack.c.b16 %v1457, %v1453
    %v1654 = vpack.c.b16 %v1462, %v1458
    %v1655 = vpack.c.b16 %v1463, %v1459
    %v1656 = vpack.c.b16 %v1464, %v1460
    %v1657 = vpack.c.b16 %v1465, %v1461
    %v1658 = vpack.c.b16 %v1470, %v1466
    %v1659 = vpack.c.b16 %v1471, %v1467
    %v1660 = vpack.c.b16 %v1472, %v1468
    %v1661 = vpack.c.b16 %v1473, %v1469
    %v1662 = vpack.c.b16 %v1478, %v1474
    %v1663 = vpack.c.b16 %v1479, %v1475
    %v1664 = vpack.c.b16 %v1480, %v1476
    %v1665 = vpack.c.b16 %v1481, %v1477
    %v1666 = vpack.c.b16 %v1486, %v1482
    %v1667 = vpack.c.b16 %v1487, %v1483
    %v1668 = vpack.c.b16 %v1488, %v1484
    %v1669 = vpack.c.b16 %v1489, %v1485
    %v1670 = vpack.c.b16 %v1494, %v1490
    %v1671 = vpack.c.b16 %v1495, %v1491
    %v1672 = vpack.c.b16 %v1496, %v1492
    %v1673 = vpack.c.b16 %v1497, %v1493
    %v1674 = vpack.c.b16 %v1502, %v1498
    %v1675 = vpack.c.b16 %v1503, %v1499
    %v1676 = vpack.c.b16 %v1504, %v1500
    %v1677 = vpack.c.b16 %v1505, %v1501
    %v1678 = vpack.c.b16 %v1510, %v1506
    %v1679 = vpack.c.b16 %v1511, %v1507
    %v1680 = vpack.c.b16 %v1512, %v1508
    %v1681 = vpack.c.b16 %v1513, %v1509
    %v1682 = vpack.c.b16 %v1518, %v1514
    %v1683 = vpack.c.b16 %v1519, %v1515
    %v1684 = vpack.c.b16 %v1520, %v1516
    %v1685 = vpack.c.b16 %v1521, %v1517
    %v1686 = vpack.c.b16 %v1526, %v1522
    %v1687 = vpack.c.b16 %v1527, %v1523
    %v1688 = vpack.c.b16 %v1528, %v1524
    %v1689 = vpack.c.b16 %v1529, %v1525
    %v1690 = vpack.c.b16 %v1534, %v1530
    %v1691 = vpack.c.b16 %v1535, %v1531
    %v1692 = vpack.c.b16 %v1536, %v1532
    %v1693 = vpack.c.b16 %v1537, %v1533
    %v1694 = vpack.c.b16 %v1542, %v1538
    %v1695 = vpack.c.b16 %v1543, %v1539
    %v1696 = vpack.c.b16 %v1544, %v1540
    %v1697 = vpack.c.b16 %v1545, %v1541
    %v1698 = vpack.c.b16 %v1550, %v1546
    %v1699 = vpack.c.b16 %v1551, %v1547
    %v1700 = vpack.c.b16 %v1552, %v1548
    %v1701 = vpack.c.b16 %v1553, %v1549
    %v1702 = vpack.c.b16 %v1558, %v1554
    %v1703 = vpack.c.b16 %v1559, %v1555
    %v1704 = vpack.c.b16 %v1560, %v1556
    %v1705 = vpack.c.b16 %v1561, %v1557
    %v1706 = vpack.c.b16 %v1566, %v1562
    %v1707 = vpack.c.b16 %v1567, %v1563
    %v1708 = vpack.c.b16 %v1568, %v1564
    %v1709 = vpack.c.b16 %v1569, %v1565
    %v1710 = vpack.c.b16 %v1574, %v1570
    %v1711 = vpack.c.b16 %v1575, %v1571
    %v1712 = vpack.c.b16 %v1576, %v1572
    %v1713 = vpack.c.b16 %v1577, %v1573
    %v1714 = vpack.c.b16 %v1582, %v1578
    %v1715 = vpack.c.b16 %v1583, %v1579
    %v1716 = vpack.c.b16 %v1584, %v1580
    %v1717 = vpack.c.b16 %v1585, %v1581
    %v1718 = vpack.c.b16 %v1590, %v1586
    %v1719 = vpack.c.b16 %v1591, %v1587
    %v1720 = vpack.c.b16 %v1592, %v1588
    %v1721 = vpack.c.b16 %v1593, %v1589
    %1850 = vmatprep.subr.bf16.mxu0 %v1595
    %1851 = vmatpush1.bf16.msra.mxu0 %v1594
    %1852 = vmatprep.subr.bf16.mxu0 %v1599
    %1853 = vmatpush1.bf16.msra.mxu0 %v1598
    %1854 = vmatprep.subr.bf16.mxu0 %v1603
    %1855 = vmatpush1.bf16.msra.mxu0 %v1602
    %1856 = vmatprep.subr.bf16.mxu0 %v1607
    %1857 = vmatpush1.bf16.msra.mxu0 %v1606
    %1858 = vmatprep.subr.bf16.mxu0 %v1611
    %1859 = vmatpush1.bf16.msra.mxu0 %v1610
    %1860 = vmatprep.subr.bf16.mxu0 %v1615
    %1861 = vmatpush1.bf16.msra.mxu0 %v1614
    %1862 = vmatprep.subr.bf16.mxu0 %v1619
    %1863 = vmatpush1.bf16.msra.mxu0 %v1618
    %1864 = vmatprep.subr.bf16.mxu0 %v1623
    %1865 = vmatpush1.bf16.msra.mxu0 %v1622
    %1866 = vmatprep.subr.bf16.mxu0 %v1627
    %1867 = vmatpush1.bf16.msra.mxu0 %v1626
    %1868 = vmatprep.subr.bf16.mxu0 %v1631
    %1869 = vmatpush1.bf16.msra.mxu0 %v1630
    %1870 = vmatprep.subr.bf16.mxu0 %v1635
    %1871 = vmatpush1.bf16.msra.mxu0 %v1634
    %1872 = vmatprep.subr.bf16.mxu0 %v1639
    %1873 = vmatpush1.bf16.msra.mxu0 %v1638
    %1874 = vmatprep.subr.bf16.mxu0 %v1643
    %1875 = vmatpush1.bf16.msra.mxu0 %v1642
    %1876 = vmatprep.subr.bf16.mxu0 %v1647
    %1877 = vmatpush1.bf16.msra.mxu0 %v1646
    %1878 = vmatprep.subr.bf16.mxu0 %v1651
    %1879 = vmatpush1.bf16.msra.mxu0 %v1650
    %1880 = vmatprep.subr.bf16.mxu0 %v1655
    %1881 = vmatpush1.bf16.msra.mxu0 %v1654
    %1882 = vmatprep.mubr.bf16.mxu0 %v1057
    %1883 = vmatmul.mubr.bf16.gmra.mrb[0].mxu0 %v1056
    %v1884 = vpop.f32.mrb[0].mxu0
    %v1885 = vadd.f32 %v1193, %v1884
    %v1886 = vpop.f32.mrb[0].mxu0
    %v1887 = vadd.f32 %v1197, %v1886
    %v1888 = vpop.f32.mrb[0].mxu0
    %v1889 = vadd.f32 %v1193, %v1888
    %v1890 = vpop.f32.mrb[0].mxu0
    %v1891 = vadd.f32 %v1197, %v1890
    %1892 = vdwg.mxu0
    %1893 = vmatprep.subr.bf16.mxu0 %v1659
    %1894 = vmatpush1.bf16.msra.mxu0 %v1658
    %1895 = vmatprep.subr.bf16.mxu0 %v1663
    %1896 = vmatpush1.bf16.msra.mxu0 %v1662
    %1897 = vmatprep.subr.bf16.mxu0 %v1667
    %1898 = vmatpush1.bf16.msra.mxu0 %v1666
    %1899 = vmatprep.subr.bf16.mxu0 %v1671
    %1900 = vmatpush1.bf16.msra.mxu0 %v1670
    %1901 = vmatprep.subr.bf16.mxu0 %v1675
    %1902 = vmatpush1.bf16.msra.mxu0 %v1674
    %1903 = vmatprep.subr.bf16.mxu0 %v1679
    %1904 = vmatpush1.bf16.msra.mxu0 %v1678
    %1905 = vmatprep.subr.bf16.mxu0 %v1683
    %1906 = vmatpush1.bf16.msra.mxu0 %v1682
    %1907 = vmatprep.subr.bf16.mxu0 %v1687
    %1908 = vmatpush1.bf16.msra.mxu0 %v1686
    %1909 = vmatprep.subr.bf16.mxu0 %v1691
    %1910 = vmatpush1.bf16.msra.mxu0 %v1690
    %1911 = vmatprep.subr.bf16.mxu0 %v1695
    %1912 = vmatpush1.bf16.msra.mxu0 %v1694
    %1913 = vmatprep.subr.bf16.mxu0 %v1699
    %1914 = vmatpush1.bf16.msra.mxu0 %v1698
    %1915 = vmatprep.subr.bf16.mxu0 %v1703
    %1916 = vmatpush1.bf16.msra.mxu0 %v1702
    %1917 = vmatprep.subr.bf16.mxu0 %v1707
    %1918 = vmatpush1.bf16.msra.mxu0 %v1706
    %1919 = vmatprep.subr.bf16.mxu0 %v1711
    %1920 = vmatpush1.bf16.msra.mxu0 %v1710
    %1921 = vmatprep.subr.bf16.mxu0 %v1715
    %1922 = vmatpush1.bf16.msra.mxu0 %v1714
    %1923 = vmatprep.subr.bf16.mxu0 %v1719
    %1924 = vmatpush1.bf16.msra.mxu0 %v1718
    %1925 = vmatprep.mubr.bf16.mxu0 %v1059
    %1926 = vmatmul.mubr.bf16.gmra.mrb[0].mxu0 %v1058
    %v1927 = vpop.f32.mrb[0].mxu0
    %v1928 = vadd.f32 %v1885, %v1927
    %v1929 = vpop.f32.mrb[0].mxu0
    %v1930 = vadd.f32 %v1887, %v1929
    %v1931 = vpop.f32.mrb[0].mxu0
    %v1932 = vadd.f32 %v1889, %v1931
    %v1933 = vpop.f32.mrb[0].mxu0
    %v1934 = vadd.f32 %v1891, %v1933
    %1935 = vdwg.mxu0
    %1936 = vmatprep.subr.bf16.mxu0 %v1597
    %1937 = vmatpush1.bf16.msra.mxu0 %v1596
    %1938 = vmatprep.subr.bf16.mxu0 %v1601
    %1939 = vmatpush1.bf16.msra.mxu0 %v1600
    %1940 = vmatprep.subr.bf16.mxu0 %v1605
    %1941 = vmatpush1.bf16.msra.mxu0 %v1604
    %1942 = vmatprep.subr.bf16.mxu0 %v1609
    %1943 = vmatpush1.bf16.msra.mxu0 %v1608
    %1944 = vmatprep.subr.bf16.mxu0 %v1613
    %1945 = vmatpush1.bf16.msra.mxu0 %v1612
    %1946 = vmatprep.subr.bf16.mxu0 %v1617
    %1947 = vmatpush1.bf16.msra.mxu0 %v1616
    %1948 = vmatprep.subr.bf16.mxu0 %v1621
    %1949 = vmatpush1.bf16.msra.mxu0 %v1620
    %1950 = vmatprep.subr.bf16.mxu0 %v1625
    %1951 = vmatpush1.bf16.msra.mxu0 %v1624
    %1952 = vmatprep.subr.bf16.mxu0 %v1629
    %1953 = vmatpush1.bf16.msra.mxu0 %v1628
    %1954 = vmatprep.subr.bf16.mxu0 %v1633
    %1955 = vmatpush1.bf16.msra.mxu0 %v1632
    %1956 = vmatprep.subr.bf16.mxu0 %v1637
    %1957 = vmatpush1.bf16.msra.mxu0 %v1636
    %1958 = vmatprep.subr.bf16.mxu0 %v1641
    %1959 = vmatpush1.bf16.msra.mxu0 %v1640
    %1960 = vmatprep.subr.bf16.mxu0 %v1645
    %1961 = vmatpush1.bf16.msra.mxu0 %v1644
    %1962 = vmatprep.subr.bf16.mxu0 %v1649
    %1963 = vmatpush1.bf16.msra.mxu0 %v1648
    %1964 = vmatprep.subr.bf16.mxu0 %v1653
    %1965 = vmatpush1.bf16.msra.mxu0 %v1652
    %1966 = vmatprep.subr.bf16.mxu0 %v1657
    %1967 = vmatpush1.bf16.msra.mxu0 %v1656
    %1968 = vmatprep.mubr.bf16.mxu0 %v1057
    %1969 = vmatmul.mubr.bf16.gmra.mrb[0].mxu0 %v1056
    %v1970 = vpop.f32.mrb[0].mxu0
    %v1971 = vadd.f32 %v1201, %v1970
    %v1972 = vpop.f32.mrb[0].mxu0
    %v1973 = vadd.f32 %v1205, %v1972
    %v1974 = vpop.f32.mrb[0].mxu0
    %v1975 = vadd.f32 %v1201, %v1974
    %v1976 = vpop.f32.mrb[0].mxu0
    %v1977 = vadd.f32 %v1205, %v1976
    %1978 = vdwg.mxu0
    %1979 = vmatprep.subr.bf16.mxu0 %v1661
    %1980 = vmatpush1.bf16.msra.mxu0 %v1660
    %1981 = vmatprep.subr.bf16.mxu0 %v1665
    %1982 = vmatpush1.bf16.msra.mxu0 %v1664
    %1983 = vmatprep.subr.bf16.mxu0 %v1669
    %1984 = vmatpush1.bf16.msra.mxu0 %v1668
    %1985 = vmatprep.subr.bf16.mxu0 %v1673
    %1986 = vmatpush1.bf16.msra.mxu0 %v1672
    %1987 = vmatprep.subr.bf16.mxu0 %v1677
    %1988 = vmatpush1.bf16.msra.mxu0 %v1676
    %1989 = vmatprep.subr.bf16.mxu0 %v1681
    %1990 = vmatpush1.bf16.msra.mxu0 %v1680
    %1991 = vmatprep.subr.bf16.mxu0 %v1685
    %1992 = vmatpush1.bf16.msra.mxu0 %v1684
    %1993 = vmatprep.subr.bf16.mxu0 %v1689
    %1994 = vmatpush1.bf16.msra.mxu0 %v1688
    %1995 = vmatprep.subr.bf16.mxu0 %v1693
    %1996 = vmatpush1.bf16.msra.mxu0 %v1692
    %1997 = vmatprep.subr.bf16.mxu0 %v1697
    %1998 = vmatpush1.bf16.msra.mxu0 %v1696
    %1999 = vmatprep.subr.bf16.mxu0 %v1701
    %2000 = vmatpush1.bf16.msra.mxu0 %v1700
    %2001 = vmatprep.subr.bf16.mxu0 %v1705
    %2002 = vmatpush1.bf16.msra.mxu0 %v1704
    %2003 = vmatprep.subr.bf16.mxu0 %v1709
    %2004 = vmatpush1.bf16.msra.mxu0 %v1708
    %2005 = vmatprep.subr.bf16.mxu0 %v1713
    %2006 = vmatpush1.bf16.msra.mxu0 %v1712
    %2007 = vmatprep.subr.bf16.mxu0 %v1717
    %2008 = vmatpush1.bf16.msra.mxu0 %v1716
    %2009 = vmatprep.subr.bf16.mxu0 %v1721
    %2010 = vmatpush1.bf16.msra.mxu0 %v1720
    %2011 = vmatprep.mubr.bf16.mxu0 %v1059
    %2012 = vmatmul.mubr.bf16.gmra.mrb[0].mxu0 %v1058
    %v2013 = vpop.f32.mrb[0].mxu0
    %v2014 = vadd.f32 %v1971, %v2013
    %v2015 = vpop.f32.mrb[0].mxu0
    %v2016 = vadd.f32 %v1973, %v2015
    %v2017 = vpop.f32.mrb[0].mxu0
    %v2018 = vadd.f32 %v1975, %v2017
    %v2019 = vpop.f32.mrb[0].mxu0
    %v2020 = vadd.f32 %v1977, %v2019
    %2021 = vdwg.mxu0
    %2022 = vst [vmem:[#allocation8] sm:$0xff] %v1928
    %2023 = vst [vmem:[#allocation8 + $0x8] sm:$0xff] %v1930
    %2024 = vst [vmem:[#allocation8 + $0x10] sm:$0xff] %v2014
    %2025 = vst [vmem:[#allocation8 + $0x18] sm:$0xff] %v2016
    %2026 = vst [vmem:[#allocation8 + $0x20] sm:$0xff] %v1932
    %2027 = vst [vmem:[#allocation8 + $0x28] sm:$0xff] %v1934
    %2028 = vst [vmem:[#allocation8 + $0x30] sm:$0xff] %v2018
    %2029 = vst [vmem:[#allocation8 + $0x38] sm:$0xff] %v2020
    // Predicated region
    $region34: #{tpu_custom_call.1} parent=1 // pred_check
      _
    $region35: #{tpu_custom_call.1} parent=1 // pred_check_branch
      %2031 = sbr.rel (0) target = $region37
    $region36: #{tpu_custom_call.1} parent=1 // pred_region
      %s2033 = ssub.s32 1024, 1024
      %2034 = vsyncadd [#allocation4], %s2033
      %s2035 = sshll.u32 [#allocation8], 4
      %s2036 = int_to_ptr.vmem [resolvable:$true] %s2035
      %2041 = dma.vmem_to_hbm [thread:$0]  %s2036, 1024, %s5, [#allocation4], 512, 512, 32
    $region37: #{tpu_custom_call.1} parent=1 // pred_fallthru
      _
    // Predicated region
    $region38: #{tpu_custom_call.1} parent=1 // pred_check
      _
    $region39: #{tpu_custom_call.1} parent=1 // pred_check_branch
      %2043 = sbr.rel (0) target = $region41
    $region40: #{tpu_custom_call.1} parent=1 // pred_region
      %2044 = dma.done [#allocation4], 1024
    $region41: #{tpu_custom_call.1} parent=1 // pred_fallthru
      _
    %2045 = vsyncpa [#allocation3], 1
    %2046 = vsyncpa [#allocation6], 1
    %2047 = vsyncpa [#allocation4], 1

</llo_original>
